<compile_context>
chip_gen: v7x
topology: tpu7x:2x2x1
jax: 0.10.0
libtpu: 0.0.40
codegen_flags: <defaults>
</compile_context>

<pallas_src>
import functools

import jax
import jax.numpy as jnp
from jax import lax
from jax.experimental import pallas as pl
from jax.experimental.pallas import tpu as pltpu

BN_EPS = 1e-5
IN_F = 28 * 28          # 784 logical input features
H1, H2, H3 = 256, 128, 128
OUT_F = 27              # logical output features
OUT_F_PAD = 128         # lane-dense output stores

FUSED_B_MAX = 1024      # whole-batch single-kernel path up to this many padded rows
TILE_B_MAX = 1024       # batch tile for the two-stage tiled path
VMEM_LIMIT = 32 * 1024 * 1024   # scoped-VMEM budget, safe on v5e/v6e/v7x


def _round_up(a, m):
    return (a + m - 1) // m * m


# ---------------------------------------------------------------------------
# Fused kernel: whole (padded) batch in one tile, BN stats computed in VMEM.
# ---------------------------------------------------------------------------
def _fused_kernel(x_ref, w1_ref, b1_ref, w2_ref, b2_ref, gamma_ref, beta_ref,
                  w3_ref, b3_ref, w4_ref, b4_ref, o_ref, *, n_valid):
    x = x_ref[...].astype(jnp.bfloat16)                                  # (BP, 784)
    h1 = jnp.dot(x, w1_ref[...], preferred_element_type=jnp.float32) + b1_ref[...]
    h1 = jnp.maximum(h1, 0.0)
    h2 = jnp.dot(h1.astype(jnp.bfloat16), w2_ref[...],
                 preferred_element_type=jnp.float32) + b2_ref[...]
    h2 = jnp.maximum(h2, 0.0)                                            # (BP, 128) f32

    # BatchNorm1d (train mode): biased full-batch stats over REAL rows only.
    valid = lax.broadcasted_iota(jnp.int32, (h2.shape[0], 1), 0) < n_valid
    inv_n = 1.0 / n_valid
    h2m = jnp.where(valid, h2, 0.0)
    mean = jnp.sum(h2m, axis=0, keepdims=True) * inv_n
    cen = jnp.where(valid, h2 - mean, 0.0)
    var = jnp.sum(cen * cen, axis=0, keepdims=True) * inv_n
    scale = gamma_ref[...] * lax.rsqrt(var + BN_EPS)
    h2n = (h2 - mean) * scale + beta_ref[...]

    h3 = jnp.dot(h2n.astype(jnp.bfloat16), w3_ref[...],
                 preferred_element_type=jnp.float32) + b3_ref[...]
    h3 = jnp.maximum(h3, 0.0)
    out = jnp.dot(h3.astype(jnp.bfloat16), w4_ref[...],
                  preferred_element_type=jnp.float32) + b4_ref[...]
    o_ref[...] = jnp.maximum(out, 0.0)                                   # (BP, 128)


# ---------------------------------------------------------------------------
# Tiled path, stage 1: ReLU(Linear1) -> ReLU(Linear2); emits bf16 h2 and f32
# per-tile BN partial sums (padded rows masked out of the statistics).
# ---------------------------------------------------------------------------
def _stage1_kernel(x_ref, w1_ref, b1_ref, w2_ref, b2_ref, h2_ref, stats_ref,
                   *, tile_b, n_valid):
    x = x_ref[...].astype(jnp.bfloat16)                                  # (TB, 784)
    h1 = jnp.dot(x, w1_ref[...], preferred_element_type=jnp.float32) + b1_ref[...]
    h1 = jnp.maximum(h1, 0.0)
    h2 = jnp.dot(h1.astype(jnp.bfloat16), w2_ref[...],
                 preferred_element_type=jnp.float32) + b2_ref[...]
    h2 = jnp.maximum(h2, 0.0)                                            # (TB, 128) f32
    h2_ref[...] = h2.astype(jnp.bfloat16)                                # bf16 to HBM

    row0 = pl.program_id(0) * tile_b
    valid = (lax.broadcasted_iota(jnp.int32, (tile_b, 1), 0) + row0) < n_valid
    h2m = jnp.where(valid, h2, 0.0)
    s1 = jnp.sum(h2m, axis=0, keepdims=True)                             # (1, 128)
    s2 = jnp.sum(h2m * h2m, axis=0, keepdims=True)                       # (1, 128)
    stats_ref[...] = jnp.concatenate([s1, s2], axis=0).reshape(1, 2, h2.shape[1])


# ---------------------------------------------------------------------------
# Tiled path, stage 2: BN already folded into (w3', b3') -> ReLU -> Linear4 -> ReLU
# ---------------------------------------------------------------------------
def _stage2_kernel(h2_ref, w3_ref, b3_ref, w4_ref, b4_ref, o_ref):
    h3 = jnp.dot(h2_ref[...], w3_ref[...],
                 preferred_element_type=jnp.float32) + b3_ref[...]
    h3 = jnp.maximum(h3, 0.0)
    out = jnp.dot(h3.astype(jnp.bfloat16), w4_ref[...],
                  preferred_element_type=jnp.float32) + b4_ref[...]
    o_ref[...] = jnp.maximum(out, 0.0)                                   # (TB, 128)


def linear_model_forward(x, packed_params, *, fused_b_max=FUSED_B_MAX,
                         tile_b_max=TILE_B_MAX):
    """x: (B, 784) float32 -> (B, 27) float32 (train-mode BatchNorm semantics)."""
    (w1, b1, w2, b2, gamma, beta, w3, b3, w4, b4) = packed_params
    B = x.shape[0]

    def cparams(sem):
        return pltpu.CompilerParams(dimension_semantics=sem,
                                    vmem_limit_bytes=VMEM_LIMIT)

    const = lambda i: (0, 0)
    row = lambda i: (i, 0)

    # ------------------ fused single-kernel path (small/medium B) ------------------
    if _round_up(B, 16) <= fused_b_max:
        b_pad = _round_up(B, 16)
        x_pad = jnp.pad(x, ((0, b_pad - B), (0, 0)))           # f32, rows only
        cost = pl.CostEstimate(
            flops=2 * b_pad * (IN_F * H1 + H1 * H2 + H2 * H3 + H3 * OUT_F_PAD),
            transcendentals=H2,
            bytes_accessed=x_pad.size * 4 + b_pad * OUT_F_PAD * 4
            + 2 * (w1.size + w2.size + w3.size + w4.size)
            + 4 * (b1.size + b2.size + b3.size + b4.size + gamma.size + beta.size))
        out = pl.pallas_call(
            functools.partial(_fused_kernel, n_valid=B),
            out_shape=jax.ShapeDtypeStruct((b_pad, OUT_F_PAD), jnp.float32),
            grid=(1,),
            in_specs=[pl.BlockSpec((b_pad, IN_F), const),
                      pl.BlockSpec((IN_F, H1), const),
                      pl.BlockSpec((1, H1), const),
                      pl.BlockSpec((H1, H2), const),
                      pl.BlockSpec((1, H2), const),
                      pl.BlockSpec((1, H2), const),       # gamma
                      pl.BlockSpec((1, H2), const),       # beta
                      pl.BlockSpec((H2, H3), const),
                      pl.BlockSpec((1, H3), const),
                      pl.BlockSpec((H3, OUT_F_PAD), const),
                      pl.BlockSpec((1, OUT_F_PAD), const)],
            out_specs=pl.BlockSpec((b_pad, OUT_F_PAD), const),
            compiler_params=cparams(("arbitrary",)),
            cost_estimate=cost,
        )(x_pad, w1, b1, w2, b2, gamma, beta, w3, b3, w4, b4)
        return out[:B, :OUT_F]

    # ------------------ tiled two-stage path (large B) ------------------
    tile_b = min(tile_b_max, _round_up(B, 16))
    b_pad = _round_up(B, tile_b)
    n_tiles = b_pad // tile_b
    if n_tiles == 1 and b_pad >= 32:
        tile_b = b_pad // 2            # keep both v7x TensorCores busy
        n_tiles = 2
    x_pad = jnp.pad(x, ((0, b_pad - B), (0, 0)))               # f32, rows only

    stage1_cost = pl.CostEstimate(
        flops=2 * b_pad * (IN_F * H1 + H1 * H2),
        transcendentals=0,
        bytes_accessed=x_pad.size * 4 + 2 * (w1.size + w2.size)
        + 4 * (b1.size + b2.size) + b_pad * H2 * 2 + n_tiles * 2 * H2 * 4)
    h2, stats = pl.pallas_call(
        functools.partial(_stage1_kernel, tile_b=tile_b, n_valid=B),
        out_shape=(jax.ShapeDtypeStruct((b_pad, H2), jnp.bfloat16),
                   jax.ShapeDtypeStruct((n_tiles, 2, H2), jnp.float32)),
        grid=(n_tiles,),
        in_specs=[pl.BlockSpec((tile_b, IN_F), row),
                  pl.BlockSpec((IN_F, H1), const),
                  pl.BlockSpec((1, H1), const),
                  pl.BlockSpec((H1, H2), const),
                  pl.BlockSpec((1, H2), const)],
        out_specs=(pl.BlockSpec((tile_b, H2), row),
                   pl.BlockSpec((1, 2, H2), lambda i: (i, 0, 0))),
        compiler_params=cparams(("parallel",)),
        cost_estimate=stage1_cost,
    )(x_pad, w1, b1, w2, b2)

    # Full-batch BN stats from f32 partial sums; fold BN into Linear3 (tiny XLA glue).
    tot = jnp.sum(stats, axis=0)                               # (2, H2)
    mean = tot[0:1] / B
    var = jnp.maximum(tot[1:2] / B - mean * mean, 0.0)         # biased variance
    scale = gamma * lax.rsqrt(var + BN_EPS)                    # (1, H2)
    shift = beta - mean * scale                                # (1, H2)
    w3_f32 = w3.astype(jnp.float32)
    w3_fold = (scale.reshape(H2, 1) * w3_f32).astype(jnp.bfloat16)
    b3_fold = shift @ w3_f32 + b3                              # (1, H3) f32

    stage2_cost = pl.CostEstimate(
        flops=2 * b_pad * (H2 * H3 + H3 * OUT_F_PAD),
        transcendentals=0,
        bytes_accessed=b_pad * H2 * 2 + 2 * (w3.size + w4.size)
        + 4 * (b3.size + b4.size) + b_pad * OUT_F_PAD * 4)
    out = pl.pallas_call(
        _stage2_kernel,
        out_shape=jax.ShapeDtypeStruct((b_pad, OUT_F_PAD), jnp.float32),
        grid=(n_tiles,),
        in_specs=[pl.BlockSpec((tile_b, H2), row),
                  pl.BlockSpec((H2, H3), const),
                  pl.BlockSpec((1, H3), const),
                  pl.BlockSpec((H3, OUT_F_PAD), const),
                  pl.BlockSpec((1, OUT_F_PAD), const)],
        out_specs=pl.BlockSpec((tile_b, OUT_F_PAD), row),
        compiler_params=cparams(("parallel",)),
        cost_estimate=stage2_cost,
    )(h2, w3_fold, b3_fold, w4, b4)
    return out[:B, :OUT_F]


# ---------------------------------------------------------------------------
# Parameters (weights stored pre-transposed as (in, out)) and a pure-JAX reference.
# ---------------------------------------------------------------------------
def init_params(key):
    ks = jax.random.split(key, 8)

    def lin(kw, kb, fan_in, fan_out):
        bound = 1.0 / jnp.sqrt(fan_in)
        w = jax.random.uniform(kw, (fan_in, fan_out), jnp.float32, -bound, bound)
        b = jax.random.uniform(kb, (1, fan_out), jnp.float32, -bound, bound)
        return w, b

    w1, b1 = lin(ks[0], ks[1], IN_F, H1)
    w2, b2 = lin(ks[2], ks[3], H1, H2)
    gamma = jnp.ones((1, H2), jnp.float32)   # BatchNorm1d default weight
    beta = jnp.zeros((1, H2), jnp.float32)   # BatchNorm1d default bias
    w3, b3 = lin(ks[4], ks[5], H2, H3)
    w4, b4 = lin(ks[6], ks[7], H3, OUT_F)
    return (w1, b1, w2, b2, gamma, beta, w3, b3, w4, b4)


def pack_params(params):
    """Kernel-ready params: bf16 matmul weights, w4/b4 padded 27 -> 128 output cols."""
    (w1, b1, w2, b2, gamma, beta, w3, b3, w4, b4) = params
    w4p = jnp.pad(w4, ((0, 0), (0, OUT_F_PAD - OUT_F))).astype(jnp.bfloat16)
    b4p = jnp.pad(b4, ((0, 0), (0, OUT_F_PAD - OUT_F)))
    return (w1.astype(jnp.bfloat16), b1, w2.astype(jnp.bfloat16), b2,
            gamma, beta, w3.astype(jnp.bfloat16), b3, w4p, b4p)


def reference_forward(x, params):
    (w1, b1, w2, b2, gamma, beta, w3, b3, w4, b4) = params
    h1 = jnp.maximum(x @ w1 + b1, 0.0)
    h2 = jnp.maximum(h1 @ w2 + b2, 0.0)
    mean = jnp.mean(h2, axis=0, keepdims=True)
    var = jnp.mean(jnp.square(h2 - mean), axis=0, keepdims=True)
    h2n = (h2 - mean) / jnp.sqrt(var + BN_EPS) * gamma + beta
    h3 = jnp.maximum(h2n @ w3 + b3, 0.0)
    return jnp.maximum(h3 @ w4 + b4, 0.0)


if __name__ == "__main__":
    key = jax.random.PRNGKey(0)
    kx1, kx2, kp = jax.random.split(key, 3)
    params = init_params(kp)
    packed = pack_params(params)

    fwd = jax.jit(linear_model_forward,
                  static_argnames=("fused_b_max", "tile_b_max"))

    # Small-batch fused path (the common inference case).
    B1 = 32
    x1 = jax.random.normal(kx1, (B1, IN_F), jnp.float32)
    out1 = jax.block_until_ready(fwd(x1, packed))
    ref1 = reference_forward(x1, params)
    assert out1.shape == (B1, OUT_F) and out1.dtype == jnp.float32
    assert bool(jnp.all(jnp.isfinite(out1))) and bool(jnp.all(out1 >= 0.0))
    # bf16 GEMMs vs the f32 reference: tolerance per the parity note.
    assert bool(jnp.all(jnp.abs(out1 - ref1) <= 5e-2 + 5e-2 * jnp.abs(ref1)))

    # Tiled two-stage path (forced small tiles: exercises bf16 h2, BN partial
    # sums, padded-row masking and the BN-fold glue).
    B2 = 72
    x2 = jax.random.normal(kx2, (B2, IN_F), jnp.float32)
    out2 = jax.block_until_ready(fwd(x2, packed, fused_b_max=0, tile_b_max=32))
    ref2 = reference_forward(x2, params)
    assert out2.shape == (B2, OUT_F) and out2.dtype == jnp.float32
    assert bool(jnp.all(jnp.isfinite(out2))) and bool(jnp.all(out2 >= 0.0))
    assert bool(jnp.all(jnp.abs(out2 - ref2) <= 5e-2 + 5e-2 * jnp.abs(ref2)))

    print("KERNEL_OK")
</pallas_src>

<mosaic_0001>
module attributes {stable_mosaic.version = 11 : i64} {
  func.func @_fused_kernel(%arg0: i32, %arg1: memref<32x784xf32, #tpu.memory_space<vmem>>, %arg2: memref<784x256xbf16, #tpu.memory_space<vmem>>, %arg3: memref<1x256xf32, #tpu.memory_space<vmem>>, %arg4: memref<256x128xbf16, #tpu.memory_space<vmem>>, %arg5: memref<1x128xf32, #tpu.memory_space<vmem>>, %arg6: memref<1x128xf32, #tpu.memory_space<vmem>>, %arg7: memref<1x128xf32, #tpu.memory_space<vmem>>, %arg8: memref<128x128xbf16, #tpu.memory_space<vmem>>, %arg9: memref<1x128xf32, #tpu.memory_space<vmem>>, %arg10: memref<128x128xbf16, #tpu.memory_space<vmem>>, %arg11: memref<1x128xf32, #tpu.memory_space<vmem>>, %arg12: memref<32x128xf32, #tpu.memory_space<vmem>>) attributes {dimension_semantics = [#tpu.dimension_semantics<arbitrary>], iteration_bounds = array<i64: 1>, scalar_prefetch = 0 : i64, scratch_operands = 0 : i64, tpu.core_type = #tpu.core_type<tc>, window_params = [{pipeline_mode = #tpu.pipeline_mode<synchronous>, transform_indices = @transform_0, window_bounds = array<i64: 32, 784>}, {pipeline_mode = #tpu.pipeline_mode<synchronous>, transform_indices = @transform_1, window_bounds = array<i64: 784, 256>}, {pipeline_mode = #tpu.pipeline_mode<synchronous>, transform_indices = @transform_2, window_bounds = array<i64: 1, 256>}, {pipeline_mode = #tpu.pipeline_mode<synchronous>, transform_indices = @transform_3, window_bounds = array<i64: 256, 128>}, {pipeline_mode = #tpu.pipeline_mode<synchronous>, transform_indices = @transform_4, window_bounds = array<i64: 1, 128>}, {pipeline_mode = #tpu.pipeline_mode<synchronous>, transform_indices = @transform_5, window_bounds = array<i64: 1, 128>}, {pipeline_mode = #tpu.pipeline_mode<synchronous>, transform_indices = @transform_6, window_bounds = array<i64: 1, 128>}, {pipeline_mode = #tpu.pipeline_mode<synchronous>, transform_indices = @transform_7, window_bounds = array<i64: 128, 128>}, {pipeline_mode = #tpu.pipeline_mode<synchronous>, transform_indices = @transform_8, window_bounds = array<i64: 1, 128>}, {pipeline_mode = #tpu.pipeline_mode<synchronous>, transform_indices = @transform_9, window_bounds = array<i64: 128, 128>}, {pipeline_mode = #tpu.pipeline_mode<synchronous>, transform_indices = @transform_10, window_bounds = array<i64: 1, 128>}, {pipeline_mode = #tpu.pipeline_mode<synchronous>, transform_indices = @transform_11, window_bounds = array<i64: 32, 128>}]} {
    %c0 = arith.constant 0 : index
    %c0_0 = arith.constant 0 : index
    %0 = vector.load %arg1[%c0, %c0_0] : memref<32x784xf32, #tpu.memory_space<vmem>>, vector<32x784xf32>
    %1 = arith.truncf %0 : vector<32x784xf32> to vector<32x784xbf16>
    %c0_1 = arith.constant 0 : index
    %c0_2 = arith.constant 0 : index
    %2 = vector.load %arg2[%c0_1, %c0_2] : memref<784x256xbf16, #tpu.memory_space<vmem>>, vector<784x256xbf16>
    %cst = arith.constant dense<0.000000e+00> : vector<32x256xf32>
    %3 = tpu.matmul %1, %2, %cst {dimension_numbers = #tpu.dot_dimension_numbers<[1], [0], [0], [1], [0, 0, 1, 1], [], []>} : vector<32x784xbf16>, vector<784x256xbf16>, vector<32x256xf32> -> vector<32x256xf32>
    %c0_3 = arith.constant 0 : index
    %c0_4 = arith.constant 0 : index
    %4 = vector.load %arg3[%c0_3, %c0_4] : memref<1x256xf32, #tpu.memory_space<vmem>>, vector<1x256xf32>
    %5 = vector.broadcast %4 : vector<1x256xf32> to vector<32x256xf32>
    %6 = arith.addf %3, %5 : vector<32x256xf32>
    %cst_5 = arith.constant 0.000000e+00 : f32
    %7 = vector.broadcast %cst_5 : f32 to vector<32x256xf32>
    %8 = arith.maximumf %6, %7 : vector<32x256xf32>
    %9 = arith.truncf %8 : vector<32x256xf32> to vector<32x256xbf16>
    %c0_6 = arith.constant 0 : index
    %c0_7 = arith.constant 0 : index
    %10 = vector.load %arg4[%c0_6, %c0_7] : memref<256x128xbf16, #tpu.memory_space<vmem>>, vector<256x128xbf16>
    %cst_8 = arith.constant dense<0.000000e+00> : vector<32x128xf32>
    %11 = tpu.matmul %9, %10, %cst_8 {dimension_numbers = #tpu.dot_dimension_numbers<[1], [0], [0], [1], [0, 0, 1, 1], [], []>} : vector<32x256xbf16>, vector<256x128xbf16>, vector<32x128xf32> -> vector<32x128xf32>
    %c0_9 = arith.constant 0 : index
    %c0_10 = arith.constant 0 : index
    %12 = vector.load %arg5[%c0_9, %c0_10] : memref<1x128xf32, #tpu.memory_space<vmem>>, vector<1x128xf32>
    %13 = vector.broadcast %12 : vector<1x128xf32> to vector<32x128xf32>
    %14 = arith.addf %11, %13 : vector<32x128xf32>
    %cst_11 = arith.constant 0.000000e+00 : f32
    %15 = vector.broadcast %cst_11 : f32 to vector<32x128xf32>
    %16 = arith.maximumf %14, %15 : vector<32x128xf32>
    %17 = tpu.iota {dimensions = array<i32: 0>} : vector<32x1xi32>
    %c32_i32 = arith.constant 32 : i32
    %18 = vector.broadcast %c32_i32 : i32 to vector<32x1xi32>
    %19 = arith.cmpi slt, %17, %18 : vector<32x1xi32>
    %cst_12 = arith.constant 0.000000e+00 : f32
    %20 = vector.shape_cast %19 : vector<32x1xi1> to vector<32x1xi1>
    %21 = vector.broadcast %20 : vector<32x1xi1> to vector<32x128xi1>
    %22 = vector.broadcast %cst_12 : f32 to vector<32x128xf32>
    %23 = arith.select %21, %16, %22 : vector<32x128xi1>, vector<32x128xf32>
    %cst_13 = arith.constant dense<0.000000e+00> : vector<128xf32>
    %24 = vector.multi_reduction <add>, %23, %cst_13 [0] : vector<32x128xf32> to vector<128xf32>
    %25 = vector.shape_cast %24 : vector<128xf32> to vector<1x128xf32>
    %cst_14 = arith.constant 3.125000e-02 : f32
    %26 = vector.broadcast %cst_14 : f32 to vector<1x128xf32>
    %27 = arith.mulf %25, %26 : vector<1x128xf32>
    %28 = vector.broadcast %27 : vector<1x128xf32> to vector<32x128xf32>
    %29 = arith.subf %16, %28 : vector<32x128xf32>
    %cst_15 = arith.constant 0.000000e+00 : f32
    %30 = vector.shape_cast %19 : vector<32x1xi1> to vector<32x1xi1>
    %31 = vector.broadcast %30 : vector<32x1xi1> to vector<32x128xi1>
    %32 = vector.broadcast %cst_15 : f32 to vector<32x128xf32>
    %33 = arith.select %31, %29, %32 : vector<32x128xi1>, vector<32x128xf32>
    %34 = arith.mulf %33, %33 : vector<32x128xf32>
    %cst_16 = arith.constant dense<0.000000e+00> : vector<128xf32>
    %35 = vector.multi_reduction <add>, %34, %cst_16 [0] : vector<32x128xf32> to vector<128xf32>
    %36 = vector.shape_cast %35 : vector<128xf32> to vector<1x128xf32>
    %cst_17 = arith.constant 3.125000e-02 : f32
    %37 = vector.broadcast %cst_17 : f32 to vector<1x128xf32>
    %38 = arith.mulf %36, %37 : vector<1x128xf32>
    %c0_18 = arith.constant 0 : index
    %c0_19 = arith.constant 0 : index
    %39 = vector.load %arg6[%c0_18, %c0_19] : memref<1x128xf32, #tpu.memory_space<vmem>>, vector<1x128xf32>
    %cst_20 = arith.constant 9.99999974E-6 : f32
    %40 = vector.broadcast %cst_20 : f32 to vector<1x128xf32>
    %41 = arith.addf %38, %40 : vector<1x128xf32>
    %42 = math.rsqrt %41 : vector<1x128xf32>
    %43 = arith.mulf %39, %42 : vector<1x128xf32>
    %44 = vector.broadcast %27 : vector<1x128xf32> to vector<32x128xf32>
    %45 = arith.subf %16, %44 : vector<32x128xf32>
    %46 = vector.broadcast %43 : vector<1x128xf32> to vector<32x128xf32>
    %47 = arith.mulf %45, %46 : vector<32x128xf32>
    %c0_21 = arith.constant 0 : index
    %c0_22 = arith.constant 0 : index
    %48 = vector.load %arg7[%c0_21, %c0_22] : memref<1x128xf32, #tpu.memory_space<vmem>>, vector<1x128xf32>
    %49 = vector.broadcast %48 : vector<1x128xf32> to vector<32x128xf32>
    %50 = arith.addf %47, %49 : vector<32x128xf32>
    %51 = arith.truncf %50 : vector<32x128xf32> to vector<32x128xbf16>
    %c0_23 = arith.constant 0 : index
    %c0_24 = arith.constant 0 : index
    %52 = vector.load %arg8[%c0_23, %c0_24] : memref<128x128xbf16, #tpu.memory_space<vmem>>, vector<128x128xbf16>
    %cst_25 = arith.constant dense<0.000000e+00> : vector<32x128xf32>
    %53 = tpu.matmul %51, %52, %cst_25 {dimension_numbers = #tpu.dot_dimension_numbers<[1], [0], [0], [1], [0, 0, 1, 1], [], []>} : vector<32x128xbf16>, vector<128x128xbf16>, vector<32x128xf32> -> vector<32x128xf32>
    %c0_26 = arith.constant 0 : index
    %c0_27 = arith.constant 0 : index
    %54 = vector.load %arg9[%c0_26, %c0_27] : memref<1x128xf32, #tpu.memory_space<vmem>>, vector<1x128xf32>
    %55 = vector.broadcast %54 : vector<1x128xf32> to vector<32x128xf32>
    %56 = arith.addf %53, %55 : vector<32x128xf32>
    %cst_28 = arith.constant 0.000000e+00 : f32
    %57 = vector.broadcast %cst_28 : f32 to vector<32x128xf32>
    %58 = arith.maximumf %56, %57 : vector<32x128xf32>
    %59 = arith.truncf %58 : vector<32x128xf32> to vector<32x128xbf16>
    %c0_29 = arith.constant 0 : index
    %c0_30 = arith.constant 0 : index
    %60 = vector.load %arg10[%c0_29, %c0_30] : memref<128x128xbf16, #tpu.memory_space<vmem>>, vector<128x128xbf16>
    %cst_31 = arith.constant dense<0.000000e+00> : vector<32x128xf32>
    %61 = tpu.matmul %59, %60, %cst_31 {dimension_numbers = #tpu.dot_dimension_numbers<[1], [0], [0], [1], [0, 0, 1, 1], [], []>} : vector<32x128xbf16>, vector<128x128xbf16>, vector<32x128xf32> -> vector<32x128xf32>
    %c0_32 = arith.constant 0 : index
    %c0_33 = arith.constant 0 : index
    %62 = vector.load %arg11[%c0_32, %c0_33] : memref<1x128xf32, #tpu.memory_space<vmem>>, vector<1x128xf32>
    %63 = vector.broadcast %62 : vector<1x128xf32> to vector<32x128xf32>
    %64 = arith.addf %61, %63 : vector<32x128xf32>
    %cst_34 = arith.constant 0.000000e+00 : f32
    %65 = vector.broadcast %cst_34 : f32 to vector<32x128xf32>
    %66 = arith.maximumf %64, %65 : vector<32x128xf32>
    %c0_35 = arith.constant 0 : index
    %c0_36 = arith.constant 0 : index
    %67 = vector.load %arg12[%c0_35, %c0_36] : memref<32x128xf32, #tpu.memory_space<vmem>>, vector<32x128xf32>
    tpu.vector_store %arg12[%c0_35, %c0_36], %66 {strides = array<i32>} : memref<32x128xf32, #tpu.memory_space<vmem>>, vector<32x128xf32>,
    return
  }
  func.func @transform_0(%arg0: i32) -> (i32, i32) {
    %c0_i32 = arith.constant 0 : i32
    %c0_i32_0 = arith.constant 0 : i32
    %c0_i32_1 = arith.constant 0 : i32
    return %c0_i32, %c0_i32_0 : i32, i32
  }
  func.func @transform_1(%arg0: i32) -> (i32, i32) {
    %c0_i32 = arith.constant 0 : i32
    %c0_i32_0 = arith.constant 0 : i32
    %c0_i32_1 = arith.constant 0 : i32
    return %c0_i32, %c0_i32_0 : i32, i32
  }
  func.func @transform_2(%arg0: i32) -> (i32, i32) {
    %c0_i32 = arith.constant 0 : i32
    %c0_i32_0 = arith.constant 0 : i32
    %c0_i32_1 = arith.constant 0 : i32
    return %c0_i32, %c0_i32_0 : i32, i32
  }
  func.func @transform_3(%arg0: i32) -> (i32, i32) {
    %c0_i32 = arith.constant 0 : i32
    %c0_i32_0 = arith.constant 0 : i32
    %c0_i32_1 = arith.constant 0 : i32
    return %c0_i32, %c0_i32_0 : i32, i32
  }
  func.func @transform_4(%arg0: i32) -> (i32, i32) {
    %c0_i32 = arith.constant 0 : i32
    %c0_i32_0 = arith.constant 0 : i32
    %c0_i32_1 = arith.constant 0 : i32
    return %c0_i32, %c0_i32_0 : i32, i32
  }
  func.func @transform_5(%arg0: i32) -> (i32, i32) {
    %c0_i32 = arith.constant 0 : i32
    %c0_i32_0 = arith.constant 0 : i32
    %c0_i32_1 = arith.constant 0 : i32
    return %c0_i32, %c0_i32_0 : i32, i32
  }
  func.func @transform_6(%arg0: i32) -> (i32, i32) {
    %c0_i32 = arith.constant 0 : i32
    %c0_i32_0 = arith.constant 0 : i32
    %c0_i32_1 = arith.constant 0 : i32
    return %c0_i32, %c0_i32_0 : i32, i32
  }
  func.func @transform_7(%arg0: i32) -> (i32, i32) {
    %c0_i32 = arith.constant 0 : i32
    %c0_i32_0 = arith.constant 0 : i32
    %c0_i32_1 = arith.constant 0 : i32
    return %c0_i32, %c0_i32_0 : i32, i32
  }
  func.func @transform_8(%arg0: i32) -> (i32, i32) {
    %c0_i32 = arith.constant 0 : i32
    %c0_i32_0 = arith.constant 0 : i32
    %c0_i32_1 = arith.constant 0 : i32
    return %c0_i32, %c0_i32_0 : i32, i32
  }
  func.func @transform_9(%arg0: i32) -> (i32, i32) {
    %c0_i32 = arith.constant 0 : i32
    %c0_i32_0 = arith.constant 0 : i32
    %c0_i32_1 = arith.constant 0 : i32
    return %c0_i32, %c0_i32_0 : i32, i32
  }
  func.func @transform_10(%arg0: i32) -> (i32, i32) {
    %c0_i32 = arith.constant 0 : i32
    %c0_i32_0 = arith.constant 0 : i32
    %c0_i32_1 = arith.constant 0 : i32
    return %c0_i32, %c0_i32_0 : i32, i32
  }
  func.func @transform_11(%arg0: i32) -> (i32, i32) {
    %c0_i32 = arith.constant 0 : i32
    %c0_i32_0 = arith.constant 0 : i32
    %c0_i32_1 = arith.constant 0 : i32
    return %c0_i32, %c0_i32_0 : i32, i32
  }
}

</mosaic_0001>

<llo_original>
// kernel: linear_model_forward.1
$region0: #{linear_model_forward.1}
  #allocation0 [shape = 'u32[]', space=smem, size = 0x4, offset = 0x4, fixed_abs, tag = 'smem constant byte address 0x4 - core index']
  #allocation1 [shape = 'u32[144,128]{1,0:T(1,128)}', space=vmem, size = 0x12000, scoped, tag = 'internal scratch']
  %s0 = inlined_call_operand.hbm [shape: f32[32,784], index: 0, kind: input, shape index: {}]
  %s1 = inlined_call_operand.hbm [shape: bf16[784,256], index: 1, kind: input, shape index: {}]
  %s2 = inlined_call_operand.vmem [shape: f32[1,256], index: 2, kind: input, shape index: {}]
  %s3 = inlined_call_operand.hbm [shape: bf16[256,128], index: 3, kind: input, shape index: {}]
  %s4 = inlined_call_operand.vmem [shape: f32[1,128], index: 4, kind: input, shape index: {}]
  %s5 = inlined_call_operand.vmem [shape: f32[1,128], index: 5, kind: input, shape index: {}]
  %s6 = inlined_call_operand.vmem [shape: f32[1,128], index: 6, kind: input, shape index: {}]
  %s7 = inlined_call_operand.hbm [shape: bf16[128,128], index: 7, kind: input, shape index: {}]
  %s8 = inlined_call_operand.vmem [shape: f32[1,128], index: 8, kind: input, shape index: {}]
  %s9 = inlined_call_operand.hbm [shape: bf16[128,128], index: 9, kind: input, shape index: {}]
  %s10 = inlined_call_operand.vmem [shape: f32[1,128], index: 10, kind: input, shape index: {}]
  %s11 = inlined_call_operand.hbm [shape: f32[32,128], index: 11, kind: output, shape index: {}]
  %s12 = sld [smem:[#allocation0]]
  $region74: #{linear_model_forward.1} parent=0
    _
  %s14 = ssub.s32 1, %s12
  %s15 = scalar_select 0, %s14, %s12
  $region1: #{linear_model_forward.1} parent=0
    #allocation2 [shape = 'u8[114688]{0}', space=vmem, size = 0x1c000, scoped, tag = 'input window, operand 0, single buffered']
    #allocation3 [shape = 's32[1]{0}', space=sflag, size = 0x4, scoped, tag = 'scoped memory for linear_model_forward.1']
    #allocation4 [shape = 's32[1]{0}', space=sflag, size = 0x4, scoped, tag = 'scoped memory for linear_model_forward.1']
    #allocation5 [shape = 'u8[401408]{0}', space=vmem, size = 0x62000, scoped, tag = 'input window, operand 1, single buffered']
    #allocation6 [shape = 's32[1]{0}', space=sflag, size = 0x4, scoped, tag = 'scoped memory for linear_model_forward.1']
    #allocation7 [shape = 'u8[65536]{0}', space=vmem, size = 0x10000, scoped, tag = 'input window, operand 3, single buffered']
    #allocation8 [shape = 'u8[32768]{0}', space=vmem, size = 0x8000, scoped, tag = 'input window, operand 7, single buffered']
    #allocation9 [shape = 's32[1]{0}', space=sflag, size = 0x4, scoped, tag = 'scoped memory for linear_model_forward.1']
    #allocation10 [shape = 'u8[32768]{0}', space=vmem, size = 0x8000, scoped, tag = 'input window, operand 9, single buffered']
    #allocation11 [shape = 'u8[16384]{0}', space=vmem, size = 0x4000, scoped, tag = 'output window, operand 0, single buffered']
    %16 = vsyncpa [#allocation3], 0
    %17 = vsyncpa [#allocation6], 0
    %18 = vsyncpa [#allocation9], 0
    %19 = vsyncpa [#allocation4], 0
    // Predicated region
    $region2: #{linear_model_forward.1} parent=1 // pred_check
      _
    $region3: #{linear_model_forward.1} parent=1 // pred_check_branch
      %21 = sbr.rel (0) target = $region5
    $region4: #{linear_model_forward.1} parent=1 // pred_region
      %s23 = ssub.s32 3584, 3584
      %24 = vsyncadd [#allocation3], %s23
      %s25 = sshll.u32 [#allocation2], 4
      %s26 = int_to_ptr.vmem [resolvable:$true] %s25
      %31 = dma.hbm_to_vmem [thread:$0]  %s0, 3584, %s26, [#allocation3], 896, 896, 56
    $region5: #{linear_model_forward.1} parent=1 // pred_fallthru
      _
    // Predicated region
    $region6: #{linear_model_forward.1} parent=1 // pred_check
      _
    $region7: #{linear_model_forward.1} parent=1 // pred_check_branch
      %33 = sbr.rel (0) target = $region9
    $region8: #{linear_model_forward.1} parent=1 // pred_region
      %s35 = ssub.s32 12544, 12544
      %36 = vsyncadd [#allocation6], %s35
      %s37 = sshll.u32 [#allocation5], 4
      %s38 = int_to_ptr.vmem [resolvable:$true] %s37
      %43 = dma.hbm_to_vmem [thread:$0]  %s1, 12544, %s38, [#allocation6], 128, 128, 8
    $region9: #{linear_model_forward.1} parent=1 // pred_fallthru
      _
    // Predicated region
    $region10: #{linear_model_forward.1} parent=1 // pred_check
      _
    $region11: #{linear_model_forward.1} parent=1 // pred_check_branch
      %45 = sbr.rel (0) target = $region13
    $region12: #{linear_model_forward.1} parent=1 // pred_region
      _
    $region13: #{linear_model_forward.1} parent=1 // pred_fallthru
      _
    // Predicated region
    $region14: #{linear_model_forward.1} parent=1 // pred_check
      _
    $region15: #{linear_model_forward.1} parent=1 // pred_check_branch
      %47 = sbr.rel (0) target = $region17
    $region16: #{linear_model_forward.1} parent=1 // pred_region
      %s49 = ssub.s32 2048, 2048
      %50 = vsyncadd [#allocation6], %s49
      %s51 = sshll.u32 [#allocation7], 4
      %s52 = int_to_ptr.vmem [resolvable:$true] %s51
      %57 = dma.hbm_to_vmem [thread:$0]  %s3, 2048, %s52, [#allocation6], 64, 64, 4
    $region17: #{linear_model_forward.1} parent=1 // pred_fallthru
      _
    // Predicated region
    $region18: #{linear_model_forward.1} parent=1 // pred_check
      _
    $region19: #{linear_model_forward.1} parent=1 // pred_check_branch
      %59 = sbr.rel (0) target = $region21
    $region20: #{linear_model_forward.1} parent=1 // pred_region
      _
    $region21: #{linear_model_forward.1} parent=1 // pred_fallthru
      _
    // Predicated region
    $region22: #{linear_model_forward.1} parent=1 // pred_check
      _
    $region23: #{linear_model_forward.1} parent=1 // pred_check_branch
      %61 = sbr.rel (0) target = $region25
    $region24: #{linear_model_forward.1} parent=1 // pred_region
      _
    $region25: #{linear_model_forward.1} parent=1 // pred_fallthru
      _
    // Predicated region
    $region26: #{linear_model_forward.1} parent=1 // pred_check
      _
    $region27: #{linear_model_forward.1} parent=1 // pred_check_branch
      %63 = sbr.rel (0) target = $region29
    $region28: #{linear_model_forward.1} parent=1 // pred_region
      _
    $region29: #{linear_model_forward.1} parent=1 // pred_fallthru
      _
    // Predicated region
    $region30: #{linear_model_forward.1} parent=1 // pred_check
      _
    $region31: #{linear_model_forward.1} parent=1 // pred_check_branch
      %65 = sbr.rel (0) target = $region33
    $region32: #{linear_model_forward.1} parent=1 // pred_region
      %s67 = ssub.s32 1024, 1024
      %68 = vsyncadd [#allocation9], %s67
      %s69 = sshll.u32 [#allocation8], 4
      %s70 = int_to_ptr.vmem [resolvable:$true] %s69
      %75 = dma.hbm_to_vmem [thread:$0]  %s7, 1024, %s70, [#allocation9], 64, 64, 4
    $region33: #{linear_model_forward.1} parent=1 // pred_fallthru
      _
    // Predicated region
    $region34: #{linear_model_forward.1} parent=1 // pred_check
      _
    $region35: #{linear_model_forward.1} parent=1 // pred_check_branch
      %77 = sbr.rel (0) target = $region37
    $region36: #{linear_model_forward.1} parent=1 // pred_region
      _
    $region37: #{linear_model_forward.1} parent=1 // pred_fallthru
      _
    // Predicated region
    $region38: #{linear_model_forward.1} parent=1 // pred_check
      _
    $region39: #{linear_model_forward.1} parent=1 // pred_check_branch
      %79 = sbr.rel (0) target = $region41
    $region40: #{linear_model_forward.1} parent=1 // pred_region
      %s81 = ssub.s32 1024, 1024
      %82 = vsyncadd [#allocation9], %s81
      %s83 = sshll.u32 [#allocation10], 4
      %s84 = int_to_ptr.vmem [resolvable:$true] %s83
      %89 = dma.hbm_to_vmem [thread:$0]  %s9, 1024, %s84, [#allocation9], 64, 64, 4
    $region41: #{linear_model_forward.1} parent=1 // pred_fallthru
      _
    // Predicated region
    $region42: #{linear_model_forward.1} parent=1 // pred_check
      _
    $region43: #{linear_model_forward.1} parent=1 // pred_check_branch
      %91 = sbr.rel (0) target = $region45
    $region44: #{linear_model_forward.1} parent=1 // pred_region
      _
    $region45: #{linear_model_forward.1} parent=1 // pred_fallthru
      _
    // Predicated region
    $region46: #{linear_model_forward.1} parent=1 // pred_check
      _
    $region47: #{linear_model_forward.1} parent=1 // pred_check_branch
      %93 = sbr.rel (0) target = $region49
    $region48: #{linear_model_forward.1} parent=1 // pred_region
      %94 = dma.done [#allocation3], 3584
    $region49: #{linear_model_forward.1} parent=1 // pred_fallthru
      _
    // Predicated region
    $region50: #{linear_model_forward.1} parent=1 // pred_check
      _
    $region51: #{linear_model_forward.1} parent=1 // pred_check_branch
      %96 = sbr.rel (0) target = $region53
    $region52: #{linear_model_forward.1} parent=1 // pred_region
      %97 = dma.done [#allocation6], 12544
    $region53: #{linear_model_forward.1} parent=1 // pred_fallthru
      _
    // Predicated region
    $region54: #{linear_model_forward.1} parent=1 // pred_check
      _
    $region55: #{linear_model_forward.1} parent=1 // pred_check_branch
      %99 = sbr.rel (0) target = $region57
    $region56: #{linear_model_forward.1} parent=1 // pred_region
      %100 = dma.done [#allocation6], 2048
    $region57: #{linear_model_forward.1} parent=1 // pred_fallthru
      _
    // Predicated region
    $region58: #{linear_model_forward.1} parent=1 // pred_check
      _
    $region59: #{linear_model_forward.1} parent=1 // pred_check_branch
      %102 = sbr.rel (0) target = $region61
    $region60: #{linear_model_forward.1} parent=1 // pred_region
      %103 = dma.done [#allocation9], 1024
    $region61: #{linear_model_forward.1} parent=1 // pred_fallthru
      _
    // Predicated region
    $region62: #{linear_model_forward.1} parent=1 // pred_check
      _
    $region63: #{linear_model_forward.1} parent=1 // pred_check_branch
      %105 = sbr.rel (0) target = $region65
    $region64: #{linear_model_forward.1} parent=1 // pred_region
      %106 = dma.done [#allocation9], 1024
    $region65: #{linear_model_forward.1} parent=1 // pred_fallthru
      _
    %v108 = vld [vmem:[#allocation2] sm:$0xff]
    %v109 = vld [vmem:[#allocation2 + $0x8] sm:$0xff]
    %v110 = vld [vmem:[#allocation2 + $0x10] sm:$0xff]
    %v111 = vld [vmem:[#allocation2 + $0x18] sm:$0xff]
    %v112 = vld [vmem:[#allocation2 + $0x20] sm:$0xff]
    %v113 = vld [vmem:[#allocation2 + $0x28] sm:$0xff]
    %v114 = vld [vmem:[#allocation2 + $0x30] sm:$0xff]
    %v115 = vld [vmem:[#allocation2 + $0x38] sm:$0xff]
    %v116 = vld [vmem:[#allocation2 + $0x40] sm:$0xff]
    %v117 = vld [vmem:[#allocation2 + $0x48] sm:$0xff]
    %v118 = vld [vmem:[#allocation2 + $0x50] sm:$0xff]
    %v119 = vld [vmem:[#allocation2 + $0x58] sm:$0xff]
    %v120 = vld [vmem:[#allocation2 + $0x60] sm:$0xff]
    %v121 = vld [vmem:[#allocation2 + $0x68] sm:$0xff]
    %v122 = vld [vmem:[#allocation2 + $0x70] sm:$0xff]
    %v123 = vld [vmem:[#allocation2 + $0x78] sm:$0xff]
    %v124 = vld [vmem:[#allocation2 + $0x80] sm:$0xff]
    %v125 = vld [vmem:[#allocation2 + $0x88] sm:$0xff]
    %v126 = vld [vmem:[#allocation2 + $0x90] sm:$0xff]
    %v127 = vld [vmem:[#allocation2 + $0x98] sm:$0xff]
    %v128 = vld [vmem:[#allocation2 + $0xa0] sm:$0xff]
    %v129 = vld [vmem:[#allocation2 + $0xa8] sm:$0xff]
    %v130 = vld [vmem:[#allocation2 + $0xb0] sm:$0xff]
    %v131 = vld [vmem:[#allocation2 + $0xb8] sm:$0xff]
    %v132 = vld [vmem:[#allocation2 + $0xc0] sm:$0xff]
    %v133 = vld [vmem:[#allocation2 + $0xc8] sm:$0xff]
    %v134 = vld [vmem:[#allocation2 + $0xd0] sm:$0xff]
    %v135 = vld [vmem:[#allocation2 + $0xd8] sm:$0xff]
    %v136 = vpack.c.bf16 %v115, %v108
    %v137 = vpack.c.bf16 %v116, %v109
    %v138 = vpack.c.bf16 %v117, %v110
    %v139 = vpack.c.bf16 %v118, %v111
    %v140 = vpack.c.bf16 %v119, %v112
    %v141 = vpack.c.bf16 %v120, %v113
    %v142 = vpack.c.bf16 %v121, %v114
    %v143 = vpack.c.bf16 %v129, %v122
    %v144 = vpack.c.bf16 %v130, %v123
    %v145 = vpack.c.bf16 %v131, %v124
    %v146 = vpack.c.bf16 %v132, %v125
    %v147 = vpack.c.bf16 %v133, %v126
    %v148 = vpack.c.bf16 %v134, %v127
    %v149 = vpack.c.bf16 %v135, %v128
    %v150 = vld [vmem:[#allocation5] sm:$0xff]
    %v151 = vld [vmem:[#allocation5 + $0x8] sm:$0xff]
    %v152 = vld [vmem:[#allocation5 + $0x10] sm:$0xff]
    %v153 = vld [vmem:[#allocation5 + $0x18] sm:$0xff]
    %v154 = vld [vmem:[#allocation5 + $0x20] sm:$0xff]
    %v155 = vld [vmem:[#allocation5 + $0x28] sm:$0xff]
    %v156 = vld [vmem:[#allocation5 + $0x30] sm:$0xff]
    %v157 = vld [vmem:[#allocation5 + $0x38] sm:$0xff]
    %v158 = vld [vmem:[#allocation5 + $0x40] sm:$0xff]
    %v159 = vld [vmem:[#allocation5 + $0x48] sm:$0xff]
    %v160 = vld [vmem:[#allocation5 + $0x50] sm:$0xff]
    %v161 = vld [vmem:[#allocation5 + $0x58] sm:$0xff]
    %v162 = vld [vmem:[#allocation5 + $0x60] sm:$0xff]
    %v163 = vld [vmem:[#allocation5 + $0x68] sm:$0xff]
    %v164 = vld [vmem:[#allocation5 + $0x70] sm:$0xff]
    %v165 = vld [vmem:[#allocation5 + $0x78] sm:$0xff]
    %v166 = vld [vmem:[#allocation5 + $0x80] sm:$0xff]
    %v167 = vld [vmem:[#allocation5 + $0x88] sm:$0xff]
    %v168 = vld [vmem:[#allocation5 + $0x90] sm:$0xff]
    %v169 = vld [vmem:[#allocation5 + $0x98] sm:$0xff]
    %v170 = vld [vmem:[#allocation5 + $0xa0] sm:$0xff]
    %v171 = vld [vmem:[#allocation5 + $0xa8] sm:$0xff]
    %v172 = vld [vmem:[#allocation5 + $0xb0] sm:$0xff]
    %v173 = vld [vmem:[#allocation5 + $0xb8] sm:$0xff]
    %v174 = vld [vmem:[#allocation5 + $0xc0] sm:$0xff]
    %v175 = vld [vmem:[#allocation5 + $0xc8] sm:$0xff]
    %v176 = vld [vmem:[#allocation5 + $0xd0] sm:$0xff]
    %v177 = vld [vmem:[#allocation5 + $0xd8] sm:$0xff]
    %v178 = vld [vmem:[#allocation5 + $0xe0] sm:$0xff]
    %v179 = vld [vmem:[#allocation5 + $0xe8] sm:$0xff]
    %v180 = vld [vmem:[#allocation5 + $0xf0] sm:$0xff]
    %v181 = vld [vmem:[#allocation5 + $0xf8] sm:$0xff]
    %v182 = vld [vmem:[#allocation5 + $0x100] sm:$0xff]
    %v183 = vld [vmem:[#allocation5 + $0x108] sm:$0xff]
    %v184 = vld [vmem:[#allocation5 + $0x110] sm:$0xff]
    %v185 = vld [vmem:[#allocation5 + $0x118] sm:$0xff]
    %v186 = vld [vmem:[#allocation5 + $0x120] sm:$0xff]
    %v187 = vld [vmem:[#allocation5 + $0x128] sm:$0xff]
    %v188 = vld [vmem:[#allocation5 + $0x130] sm:$0xff]
    %v189 = vld [vmem:[#allocation5 + $0x138] sm:$0xff]
    %v190 = vld [vmem:[#allocation5 + $0x140] sm:$0xff]
    %v191 = vld [vmem:[#allocation5 + $0x148] sm:$0xff]
    %v192 = vld [vmem:[#allocation5 + $0x150] sm:$0xff]
    %v193 = vld [vmem:[#allocation5 + $0x158] sm:$0xff]
    %v194 = vld [vmem:[#allocation5 + $0x160] sm:$0xff]
    %v195 = vld [vmem:[#allocation5 + $0x168] sm:$0xff]
    %v196 = vld [vmem:[#allocation5 + $0x170] sm:$0xff]
    %v197 = vld [vmem:[#allocation5 + $0x178] sm:$0xff]
    %v198 = vld [vmem:[#allocation5 + $0x180] sm:$0xff]
    %v199 = vld [vmem:[#allocation5 + $0x188] sm:$0xff]
    %v200 = vld [vmem:[#allocation5 + $0x190] sm:$0xff]
    %v201 = vld [vmem:[#allocation5 + $0x198] sm:$0xff]
    %v202 = vld [vmem:[#allocation5 + $0x1a0] sm:$0xff]
    %v203 = vld [vmem:[#allocation5 + $0x1a8] sm:$0xff]
    %v204 = vld [vmem:[#allocation5 + $0x1b0] sm:$0xff]
    %v205 = vld [vmem:[#allocation5 + $0x1b8] sm:$0xff]
    %v206 = vld [vmem:[#allocation5 + $0x1c0] sm:$0xff]
    %v207 = vld [vmem:[#allocation5 + $0x1c8] sm:$0xff]
    %v208 = vld [vmem:[#allocation5 + $0x1d0] sm:$0xff]
    %v209 = vld [vmem:[#allocation5 + $0x1d8] sm:$0xff]
    %v210 = vld [vmem:[#allocation5 + $0x1e0] sm:$0xff]
    %v211 = vld [vmem:[#allocation5 + $0x1e8] sm:$0xff]
    %v212 = vld [vmem:[#allocation5 + $0x1f0] sm:$0xff]
    %v213 = vld [vmem:[#allocation5 + $0x1f8] sm:$0xff]
    %v214 = vld [vmem:[#allocation5 + $0x200] sm:$0xff]
    %v215 = vld [vmem:[#allocation5 + $0x208] sm:$0xff]
    %v216 = vld [vmem:[#allocation5 + $0x210] sm:$0xff]
    %v217 = vld [vmem:[#allocation5 + $0x218] sm:$0xff]
    %v218 = vld [vmem:[#allocation5 + $0x220] sm:$0xff]
    %v219 = vld [vmem:[#allocation5 + $0x228] sm:$0xff]
    %v220 = vld [vmem:[#allocation5 + $0x230] sm:$0xff]
    %v221 = vld [vmem:[#allocation5 + $0x238] sm:$0xff]
    %v222 = vld [vmem:[#allocation5 + $0x240] sm:$0xff]
    %v223 = vld [vmem:[#allocation5 + $0x248] sm:$0xff]
    %v224 = vld [vmem:[#allocation5 + $0x250] sm:$0xff]
    %v225 = vld [vmem:[#allocation5 + $0x258] sm:$0xff]
    %v226 = vld [vmem:[#allocation5 + $0x260] sm:$0xff]
    %v227 = vld [vmem:[#allocation5 + $0x268] sm:$0xff]
    %v228 = vld [vmem:[#allocation5 + $0x270] sm:$0xff]
    %v229 = vld [vmem:[#allocation5 + $0x278] sm:$0xff]
    %v230 = vld [vmem:[#allocation5 + $0x280] sm:$0xff]
    %v231 = vld [vmem:[#allocation5 + $0x288] sm:$0xff]
    %v232 = vld [vmem:[#allocation5 + $0x290] sm:$0xff]
    %v233 = vld [vmem:[#allocation5 + $0x298] sm:$0xff]
    %v234 = vld [vmem:[#allocation5 + $0x2a0] sm:$0xff]
    %v235 = vld [vmem:[#allocation5 + $0x2a8] sm:$0xff]
    %v236 = vld [vmem:[#allocation5 + $0x2b0] sm:$0xff]
    %v237 = vld [vmem:[#allocation5 + $0x2b8] sm:$0xff]
    %v238 = vld [vmem:[#allocation5 + $0x2c0] sm:$0xff]
    %v239 = vld [vmem:[#allocation5 + $0x2c8] sm:$0xff]
    %v240 = vld [vmem:[#allocation5 + $0x2d0] sm:$0xff]
    %v241 = vld [vmem:[#allocation5 + $0x2d8] sm:$0xff]
    %v242 = vld [vmem:[#allocation5 + $0x2e0] sm:$0xff]
    %v243 = vld [vmem:[#allocation5 + $0x2e8] sm:$0xff]
    %v244 = vld [vmem:[#allocation5 + $0x2f0] sm:$0xff]
    %v245 = vld [vmem:[#allocation5 + $0x2f8] sm:$0xff]
    %v246 = vld [vmem:[#allocation5 + $0x300] sm:$0xff]
    %v247 = vld [vmem:[#allocation5 + $0x308] sm:$0xff]
    %v248 = vld [vmem:[%s2] sm:$0x3]
    %v250 = vlaneseq
    %v251 = vshrl.u32 %v250, 7
    %v252 = vsub.s32 0, %v251
    %v253 = vrot.slane %v248, %v252
    %v254 = vlaneseq
    %v255 = vshrl.u32 %v254, 7
    %v256 = vsub.s32 1, %v255
    %v257 = vrot.slane %v248, %v256
    %v358 = vunpack.c.l.b16 %v150
    %v359 = vunpack.c.h.b16 %v150
    %v360 = vunpack.c.l.b16 %v151
    %v361 = vunpack.c.h.b16 %v151
    %v362 = vunpack.c.l.b16 %v152
    %v363 = vunpack.c.h.b16 %v152
    %v364 = vunpack.c.l.b16 %v153
    %v365 = vunpack.c.h.b16 %v153
    %v366 = vunpack.c.l.b16 %v154
    %v367 = vunpack.c.h.b16 %v154
    %v368 = vunpack.c.l.b16 %v155
    %v369 = vunpack.c.h.b16 %v155
    %v370 = vunpack.c.l.b16 %v156
    %v371 = vunpack.c.h.b16 %v156
    %v372 = vunpack.c.l.b16 %v157
    %v373 = vunpack.c.h.b16 %v157
    %v374 = vunpack.c.l.b16 %v158
    %v375 = vunpack.c.h.b16 %v158
    %v376 = vunpack.c.l.b16 %v159
    %v377 = vunpack.c.h.b16 %v159
    %v378 = vunpack.c.l.b16 %v160
    %v379 = vunpack.c.h.b16 %v160
    %v380 = vunpack.c.l.b16 %v161
    %v381 = vunpack.c.h.b16 %v161
    %v382 = vunpack.c.l.b16 %v162
    %v383 = vunpack.c.h.b16 %v162
    %v384 = vunpack.c.l.b16 %v163
    %v385 = vunpack.c.h.b16 %v163
    %v386 = vunpack.c.l.b16 %v164
    %v387 = vunpack.c.h.b16 %v164
    %v388 = vunpack.c.l.b16 %v165
    %v389 = vunpack.c.h.b16 %v165
    %v390 = vunpack.c.l.b16 %v166
    %v391 = vunpack.c.h.b16 %v166
    %v392 = vunpack.c.l.b16 %v167
    %v393 = vunpack.c.h.b16 %v167
    %v394 = vunpack.c.l.b16 %v168
    %v395 = vunpack.c.h.b16 %v168
    %v396 = vunpack.c.l.b16 %v169
    %v397 = vunpack.c.h.b16 %v169
    %v398 = vunpack.c.l.b16 %v170
    %v399 = vunpack.c.h.b16 %v170
    %v400 = vunpack.c.l.b16 %v171
    %v401 = vunpack.c.h.b16 %v171
    %v402 = vunpack.c.l.b16 %v172
    %v403 = vunpack.c.h.b16 %v172
    %v404 = vunpack.c.l.b16 %v173
    %v405 = vunpack.c.h.b16 %v173
    %v406 = vunpack.c.l.b16 %v174
    %v407 = vunpack.c.h.b16 %v174
    %v408 = vunpack.c.l.b16 %v175
    %v409 = vunpack.c.h.b16 %v175
    %v410 = vunpack.c.l.b16 %v176
    %v411 = vunpack.c.h.b16 %v176
    %v412 = vunpack.c.l.b16 %v177
    %v413 = vunpack.c.h.b16 %v177
    %v414 = vunpack.c.l.b16 %v178
    %v415 = vunpack.c.h.b16 %v178
    %v416 = vunpack.c.l.b16 %v179
    %v417 = vunpack.c.h.b16 %v179
    %v418 = vunpack.c.l.b16 %v180
    %v419 = vunpack.c.h.b16 %v180
    %v420 = vunpack.c.l.b16 %v181
    %v421 = vunpack.c.h.b16 %v181
    %v422 = vunpack.c.l.b16 %v182
    %v423 = vunpack.c.h.b16 %v182
    %v424 = vunpack.c.l.b16 %v183
    %v425 = vunpack.c.h.b16 %v183
    %v426 = vunpack.c.l.b16 %v184
    %v427 = vunpack.c.h.b16 %v184
    %v428 = vunpack.c.l.b16 %v185
    %v429 = vunpack.c.h.b16 %v185
    %v430 = vunpack.c.l.b16 %v186
    %v431 = vunpack.c.h.b16 %v186
    %v432 = vunpack.c.l.b16 %v187
    %v433 = vunpack.c.h.b16 %v187
    %v434 = vunpack.c.l.b16 %v188
    %v435 = vunpack.c.h.b16 %v188
    %v436 = vunpack.c.l.b16 %v189
    %v437 = vunpack.c.h.b16 %v189
    %v438 = vunpack.c.l.b16 %v190
    %v439 = vunpack.c.h.b16 %v190
    %v440 = vunpack.c.l.b16 %v191
    %v441 = vunpack.c.h.b16 %v191
    %v442 = vunpack.c.l.b16 %v192
    %v443 = vunpack.c.h.b16 %v192
    %v444 = vunpack.c.l.b16 %v193
    %v445 = vunpack.c.h.b16 %v193
    %v446 = vunpack.c.l.b16 %v194
    %v447 = vunpack.c.h.b16 %v194
    %v448 = vunpack.c.l.b16 %v195
    %v449 = vunpack.c.h.b16 %v195
    %v450 = vunpack.c.l.b16 %v196
    %v451 = vunpack.c.h.b16 %v196
    %v452 = vunpack.c.l.b16 %v197
    %v453 = vunpack.c.h.b16 %v197
    %v454 = vunpack.c.l.b16 %v198
    %v455 = vunpack.c.h.b16 %v198
    %v456 = vunpack.c.l.b16 %v199
    %v457 = vunpack.c.h.b16 %v199
    %v458 = vunpack.c.l.b16 %v200
    %v459 = vunpack.c.h.b16 %v200
    %v460 = vunpack.c.l.b16 %v201
    %v461 = vunpack.c.h.b16 %v201
    %v462 = vunpack.c.l.b16 %v202
    %v463 = vunpack.c.h.b16 %v202
    %v464 = vunpack.c.l.b16 %v203
    %v465 = vunpack.c.h.b16 %v203
    %v466 = vunpack.c.l.b16 %v204
    %v467 = vunpack.c.h.b16 %v204
    %v468 = vunpack.c.l.b16 %v205
    %v469 = vunpack.c.h.b16 %v205
    %v470 = vunpack.c.l.b16 %v206
    %v471 = vunpack.c.h.b16 %v206
    %v472 = vunpack.c.l.b16 %v207
    %v473 = vunpack.c.h.b16 %v207
    %v474 = vunpack.c.l.b16 %v208
    %v475 = vunpack.c.h.b16 %v208
    %v476 = vunpack.c.l.b16 %v209
    %v477 = vunpack.c.h.b16 %v209
    %v478 = vunpack.c.l.b16 %v210
    %v479 = vunpack.c.h.b16 %v210
    %v480 = vunpack.c.l.b16 %v211
    %v481 = vunpack.c.h.b16 %v211
    %v482 = vunpack.c.l.b16 %v212
    %v483 = vunpack.c.h.b16 %v212
    %v484 = vunpack.c.l.b16 %v213
    %v485 = vunpack.c.h.b16 %v213
    %v486 = vunpack.c.l.b16 %v214
    %v487 = vunpack.c.h.b16 %v214
    %v488 = vunpack.c.l.b16 %v215
    %v489 = vunpack.c.h.b16 %v215
    %v490 = vunpack.c.l.b16 %v216
    %v491 = vunpack.c.h.b16 %v216
    %v492 = vunpack.c.l.b16 %v217
    %v493 = vunpack.c.h.b16 %v217
    %v494 = vunpack.c.l.b16 %v218
    %v495 = vunpack.c.h.b16 %v218
    %v496 = vunpack.c.l.b16 %v219
    %v497 = vunpack.c.h.b16 %v219
    %v498 = vunpack.c.l.b16 %v220
    %v499 = vunpack.c.h.b16 %v220
    %v500 = vunpack.c.l.b16 %v221
    %v501 = vunpack.c.h.b16 %v221
    %v502 = vunpack.c.l.b16 %v222
    %v503 = vunpack.c.h.b16 %v222
    %v504 = vunpack.c.l.b16 %v223
    %v505 = vunpack.c.h.b16 %v223
    %v506 = vunpack.c.l.b16 %v224
    %v507 = vunpack.c.h.b16 %v224
    %v508 = vunpack.c.l.b16 %v225
    %v509 = vunpack.c.h.b16 %v225
    %v510 = vunpack.c.l.b16 %v226
    %v511 = vunpack.c.h.b16 %v226
    %v512 = vunpack.c.l.b16 %v227
    %v513 = vunpack.c.h.b16 %v227
    %v514 = vunpack.c.l.b16 %v228
    %v515 = vunpack.c.h.b16 %v228
    %v516 = vunpack.c.l.b16 %v229
    %v517 = vunpack.c.h.b16 %v229
    %v518 = vunpack.c.l.b16 %v230
    %v519 = vunpack.c.h.b16 %v230
    %v520 = vunpack.c.l.b16 %v231
    %v521 = vunpack.c.h.b16 %v231
    %v522 = vunpack.c.l.b16 %v232
    %v523 = vunpack.c.h.b16 %v232
    %v524 = vunpack.c.l.b16 %v233
    %v525 = vunpack.c.h.b16 %v233
    %v526 = vunpack.c.l.b16 %v234
    %v527 = vunpack.c.h.b16 %v234
    %v528 = vunpack.c.l.b16 %v235
    %v529 = vunpack.c.h.b16 %v235
    %v530 = vunpack.c.l.b16 %v236
    %v531 = vunpack.c.h.b16 %v236
    %v532 = vunpack.c.l.b16 %v237
    %v533 = vunpack.c.h.b16 %v237
    %v534 = vunpack.c.l.b16 %v238
    %v535 = vunpack.c.h.b16 %v238
    %v536 = vunpack.c.l.b16 %v239
    %v537 = vunpack.c.h.b16 %v239
    %v538 = vunpack.c.l.b16 %v240
    %v539 = vunpack.c.h.b16 %v240
    %v540 = vunpack.c.l.b16 %v241
    %v541 = vunpack.c.h.b16 %v241
    %v542 = vunpack.c.l.b16 %v242
    %v543 = vunpack.c.h.b16 %v242
    %v544 = vunpack.c.l.b16 %v243
    %v545 = vunpack.c.h.b16 %v243
    %v546 = vunpack.c.l.b16 %v244
    %v547 = vunpack.c.h.b16 %v244
    %v548 = vunpack.c.l.b16 %v245
    %v549 = vunpack.c.h.b16 %v245
    %v550 = vunpack.c.l.b16 %v246
    %v551 = vunpack.c.h.b16 %v246
    %v552 = vunpack.c.l.b16 %v247
    %v553 = vunpack.c.h.b16 %v247
    %v554 = vpack.c.b16 %v360, %v358
    %v555 = vpack.c.b16 %v361, %v359
    %v556 = vpack.c.b16 %v364, %v362
    %v557 = vpack.c.b16 %v365, %v363
    %v558 = vpack.c.b16 %v368, %v366
    %v559 = vpack.c.b16 %v369, %v367
    %v560 = vpack.c.b16 %v372, %v370
    %v561 = vpack.c.b16 %v373, %v371
    %v562 = vpack.c.b16 %v376, %v374
    %v563 = vpack.c.b16 %v377, %v375
    %v564 = vpack.c.b16 %v380, %v378
    %v565 = vpack.c.b16 %v381, %v379
    %v566 = vpack.c.b16 %v384, %v382
    %v567 = vpack.c.b16 %v385, %v383
    %v568 = vpack.c.b16 %v388, %v386
    %v569 = vpack.c.b16 %v389, %v387
    %v570 = vpack.c.b16 %v392, %v390
    %v571 = vpack.c.b16 %v393, %v391
    %v572 = vpack.c.b16 %v396, %v394
    %v573 = vpack.c.b16 %v397, %v395
    %v574 = vpack.c.b16 %v400, %v398
    %v575 = vpack.c.b16 %v401, %v399
    %v576 = vpack.c.b16 %v404, %v402
    %v577 = vpack.c.b16 %v405, %v403
    %v578 = vpack.c.b16 %v408, %v406
    %v579 = vpack.c.b16 %v409, %v407
    %v580 = vpack.c.b16 %v412, %v410
    %v581 = vpack.c.b16 %v413, %v411
    %v582 = vpack.c.b16 %v416, %v414
    %v583 = vpack.c.b16 %v417, %v415
    %v584 = vpack.c.b16 %v420, %v418
    %v585 = vpack.c.b16 %v421, %v419
    %v586 = vpack.c.b16 %v424, %v422
    %v587 = vpack.c.b16 %v425, %v423
    %v588 = vpack.c.b16 %v428, %v426
    %v589 = vpack.c.b16 %v429, %v427
    %v590 = vpack.c.b16 %v432, %v430
    %v591 = vpack.c.b16 %v433, %v431
    %v592 = vpack.c.b16 %v436, %v434
    %v593 = vpack.c.b16 %v437, %v435
    %v594 = vpack.c.b16 %v440, %v438
    %v595 = vpack.c.b16 %v441, %v439
    %v596 = vpack.c.b16 %v444, %v442
    %v597 = vpack.c.b16 %v445, %v443
    %v598 = vpack.c.b16 %v448, %v446
    %v599 = vpack.c.b16 %v449, %v447
    %v600 = vpack.c.b16 %v452, %v450
    %v601 = vpack.c.b16 %v453, %v451
    %v602 = vpack.c.b16 %v456, %v454
    %v603 = vpack.c.b16 %v457, %v455
    %v604 = vpack.c.b16 %v460, %v458
    %v605 = vpack.c.b16 %v461, %v459
    %v606 = vpack.c.b16 %v464, %v462
    %v607 = vpack.c.b16 %v465, %v463
    %v608 = vpack.c.b16 %v468, %v466
    %v609 = vpack.c.b16 %v469, %v467
    %v610 = vpack.c.b16 %v472, %v470
    %v611 = vpack.c.b16 %v473, %v471
    %v612 = vpack.c.b16 %v476, %v474
    %v613 = vpack.c.b16 %v477, %v475
    %v614 = vpack.c.b16 %v480, %v478
    %v615 = vpack.c.b16 %v481, %v479
    %v616 = vpack.c.b16 %v484, %v482
    %v617 = vpack.c.b16 %v485, %v483
    %v618 = vpack.c.b16 %v488, %v486
    %v619 = vpack.c.b16 %v489, %v487
    %v620 = vpack.c.b16 %v492, %v490
    %v621 = vpack.c.b16 %v493, %v491
    %v622 = vpack.c.b16 %v496, %v494
    %v623 = vpack.c.b16 %v497, %v495
    %v624 = vpack.c.b16 %v500, %v498
    %v625 = vpack.c.b16 %v501, %v499
    %v626 = vpack.c.b16 %v504, %v502
    %v627 = vpack.c.b16 %v505, %v503
    %v628 = vpack.c.b16 %v508, %v506
    %v629 = vpack.c.b16 %v509, %v507
    %v630 = vpack.c.b16 %v512, %v510
    %v631 = vpack.c.b16 %v513, %v511
    %v632 = vpack.c.b16 %v516, %v514
    %v633 = vpack.c.b16 %v517, %v515
    %v634 = vpack.c.b16 %v520, %v518
    %v635 = vpack.c.b16 %v521, %v519
    %v636 = vpack.c.b16 %v524, %v522
    %v637 = vpack.c.b16 %v525, %v523
    %v638 = vpack.c.b16 %v528, %v526
    %v639 = vpack.c.b16 %v529, %v527
    %v640 = vpack.c.b16 %v532, %v530
    %v641 = vpack.c.b16 %v533, %v531
    %v642 = vpack.c.b16 %v536, %v534
    %v643 = vpack.c.b16 %v537, %v535
    %v644 = vpack.c.b16 %v540, %v538
    %v645 = vpack.c.b16 %v541, %v539
    %v646 = vpack.c.b16 %v544, %v542
    %v647 = vpack.c.b16 %v545, %v543
    %v648 = vpack.c.b16 %v548, %v546
    %v649 = vpack.c.b16 %v549, %v547
    %v650 = vpack.c.b16 %v552, %v550
    %v651 = vpack.c.b16 %v553, %v551
    %vm750 = vcmask 130048
    %v752 = vsel %vm750, %v142, 0
    %v755 = vsel %vm750, %v149, 0
    %757 = vmatprep.subr.bf16.mxu0 %v555
    %758 = vmatpush1.bf16.msra.mxu0 %v554
    %759 = vmatprep.subr.bf16.mxu0 %v557
    %760 = vmatpush1.bf16.msra.mxu0 %v556
    %761 = vmatprep.subr.bf16.mxu0 %v559
    %762 = vmatpush1.bf16.msra.mxu0 %v558
    %763 = vmatprep.subr.bf16.mxu0 %v561
    %764 = vmatpush1.bf16.msra.mxu0 %v560
    %765 = vmatprep.subr.bf16.mxu0 %v563
    %766 = vmatpush1.bf16.msra.mxu0 %v562
    %767 = vmatprep.subr.bf16.mxu0 %v565
    %768 = vmatpush1.bf16.msra.mxu0 %v564
    %769 = vmatprep.subr.bf16.mxu0 %v567
    %770 = vmatpush1.bf16.msra.mxu0 %v566
    %771 = vmatprep.subr.bf16.mxu0 %v569
    %772 = vmatpush1.bf16.msra.mxu0 %v568
    %773 = vmatprep.subr.bf16.mxu0 %v571
    %774 = vmatpush1.bf16.msra.mxu0 %v570
    %775 = vmatprep.subr.bf16.mxu0 %v573
    %776 = vmatpush1.bf16.msra.mxu0 %v572
    %777 = vmatprep.subr.bf16.mxu0 %v575
    %778 = vmatpush1.bf16.msra.mxu0 %v574
    %779 = vmatprep.subr.bf16.mxu0 %v577
    %780 = vmatpush1.bf16.msra.mxu0 %v576
    %781 = vmatprep.subr.bf16.mxu0 %v579
    %782 = vmatpush1.bf16.msra.mxu0 %v578
    %783 = vmatprep.subr.bf16.mxu0 %v581
    %784 = vmatpush1.bf16.msra.mxu0 %v580
    %785 = vmatprep.subr.bf16.mxu0 %v583
    %786 = vmatpush1.bf16.msra.mxu0 %v582
    %787 = vmatprep.subr.bf16.mxu0 %v585
    %788 = vmatpush1.bf16.msra.mxu0 %v584
    %789 = vmatprep.mubr.bf16.mxu0 %v137
    %790 = vmatmul.mubr.bf16.gmra.mrb[0].mxu0 %v136
    %v791 = vpop.f32.mrb[0].mxu0
    %v792 = vadd.f32 %v253, %v791
    %v793 = vpop.f32.mrb[0].mxu0
    %v794 = vadd.f32 %v257, %v793
    %v795 = vpop.f32.mrb[0].mxu0
    %v796 = vadd.f32 %v253, %v795
    %v797 = vpop.f32.mrb[0].mxu0
    %v798 = vadd.f32 %v257, %v797
    %799 = vmatprep.mubr.bf16.mxu0 %v144
    %800 = vmatmul.mubr.bf16.gmra.mrb[0].mxu0 %v143
    %v801 = vpop.f32.mrb[0].mxu0
    %v802 = vadd.f32 %v253, %v801
    %v803 = vpop.f32.mrb[0].mxu0
    %v804 = vadd.f32 %v257, %v803
    %v805 = vpop.f32.mrb[0].mxu0
    %v806 = vadd.f32 %v253, %v805
    %v807 = vpop.f32.mrb[0].mxu0
    %v808 = vadd.f32 %v257, %v807
    %809 = vdwg.mxu0
    %810 = vmatprep.subr.bf16.mxu0 %v587
    %811 = vmatpush1.bf16.msra.mxu0 %v586
    %812 = vmatprep.subr.bf16.mxu0 %v589
    %813 = vmatpush1.bf16.msra.mxu0 %v588
    %814 = vmatprep.subr.bf16.mxu0 %v591
    %815 = vmatpush1.bf16.msra.mxu0 %v590
    %816 = vmatprep.subr.bf16.mxu0 %v593
    %817 = vmatpush1.bf16.msra.mxu0 %v592
    %818 = vmatprep.subr.bf16.mxu0 %v595
    %819 = vmatpush1.bf16.msra.mxu0 %v594
    %820 = vmatprep.subr.bf16.mxu0 %v597
    %821 = vmatpush1.bf16.msra.mxu0 %v596
    %822 = vmatprep.subr.bf16.mxu0 %v599
    %823 = vmatpush1.bf16.msra.mxu0 %v598
    %824 = vmatprep.subr.bf16.mxu0 %v601
    %825 = vmatpush1.bf16.msra.mxu0 %v600
    %826 = vmatprep.subr.bf16.mxu0 %v603
    %827 = vmatpush1.bf16.msra.mxu0 %v602
    %828 = vmatprep.subr.bf16.mxu0 %v605
    %829 = vmatpush1.bf16.msra.mxu0 %v604
    %830 = vmatprep.subr.bf16.mxu0 %v607
    %831 = vmatpush1.bf16.msra.mxu0 %v606
    %832 = vmatprep.subr.bf16.mxu0 %v609
    %833 = vmatpush1.bf16.msra.mxu0 %v608
    %834 = vmatprep.subr.bf16.mxu0 %v611
    %835 = vmatpush1.bf16.msra.mxu0 %v610
    %836 = vmatprep.subr.bf16.mxu0 %v613
    %837 = vmatpush1.bf16.msra.mxu0 %v612
    %838 = vmatprep.subr.bf16.mxu0 %v615
    %839 = vmatpush1.bf16.msra.mxu0 %v614
    %840 = vmatprep.subr.bf16.mxu0 %v617
    %841 = vmatpush1.bf16.msra.mxu0 %v616
    %842 = vmatprep.mubr.bf16.mxu0 %v139
    %843 = vmatmul.mubr.bf16.gmra.mrb[0].mxu0 %v138
    %v844 = vpop.f32.mrb[0].mxu0
    %v845 = vadd.f32 %v792, %v844
    %v846 = vpop.f32.mrb[0].mxu0
    %v847 = vadd.f32 %v794, %v846
    %v848 = vpop.f32.mrb[0].mxu0
    %v849 = vadd.f32 %v796, %v848
    %v850 = vpop.f32.mrb[0].mxu0
    %v851 = vadd.f32 %v798, %v850
    %852 = vmatprep.mubr.bf16.mxu0 %v146
    %853 = vmatmul.mubr.bf16.gmra.mrb[0].mxu0 %v145
    %v854 = vpop.f32.mrb[0].mxu0
    %v855 = vadd.f32 %v802, %v854
    %v856 = vpop.f32.mrb[0].mxu0
    %v857 = vadd.f32 %v804, %v856
    %v858 = vpop.f32.mrb[0].mxu0
    %v859 = vadd.f32 %v806, %v858
    %v860 = vpop.f32.mrb[0].mxu0
    %v861 = vadd.f32 %v808, %v860
    %862 = vdwg.mxu0
    %863 = vmatprep.subr.bf16.mxu0 %v619
    %864 = vmatpush1.bf16.msra.mxu0 %v618
    %865 = vmatprep.subr.bf16.mxu0 %v621
    %866 = vmatpush1.bf16.msra.mxu0 %v620
    %867 = vmatprep.subr.bf16.mxu0 %v623
    %868 = vmatpush1.bf16.msra.mxu0 %v622
    %869 = vmatprep.subr.bf16.mxu0 %v625
    %870 = vmatpush1.bf16.msra.mxu0 %v624
    %871 = vmatprep.subr.bf16.mxu0 %v627
    %872 = vmatpush1.bf16.msra.mxu0 %v626
    %873 = vmatprep.subr.bf16.mxu0 %v629
    %874 = vmatpush1.bf16.msra.mxu0 %v628
    %875 = vmatprep.subr.bf16.mxu0 %v631
    %876 = vmatpush1.bf16.msra.mxu0 %v630
    %877 = vmatprep.subr.bf16.mxu0 %v633
    %878 = vmatpush1.bf16.msra.mxu0 %v632
    %879 = vmatprep.subr.bf16.mxu0 %v635
    %880 = vmatpush1.bf16.msra.mxu0 %v634
    %881 = vmatprep.subr.bf16.mxu0 %v637
    %882 = vmatpush1.bf16.msra.mxu0 %v636
    %883 = vmatprep.subr.bf16.mxu0 %v639
    %884 = vmatpush1.bf16.msra.mxu0 %v638
    %885 = vmatprep.subr.bf16.mxu0 %v641
    %886 = vmatpush1.bf16.msra.mxu0 %v640
    %887 = vmatprep.subr.bf16.mxu0 %v643
    %888 = vmatpush1.bf16.msra.mxu0 %v642
    %889 = vmatprep.subr.bf16.mxu0 %v645
    %890 = vmatpush1.bf16.msra.mxu0 %v644
    %891 = vmatprep.subr.bf16.mxu0 %v647
    %892 = vmatpush1.bf16.msra.mxu0 %v646
    %893 = vmatprep.subr.bf16.mxu0 %v649
    %894 = vmatpush1.bf16.msra.mxu0 %v648
    %895 = vmatprep.mubr.bf16.mxu0 %v141
    %896 = vmatmul.mubr.bf16.gmra.mrb[0].mxu0 %v140
    %v897 = vpop.f32.mrb[0].mxu0
    %v898 = vadd.f32 %v845, %v897
    %v899 = vpop.f32.mrb[0].mxu0
    %v900 = vadd.f32 %v847, %v899
    %v901 = vpop.f32.mrb[0].mxu0
    %v902 = vadd.f32 %v849, %v901
    %v903 = vpop.f32.mrb[0].mxu0
    %v904 = vadd.f32 %v851, %v903
    %905 = vmatprep.mubr.bf16.mxu0 %v148
    %906 = vmatmul.mubr.bf16.gmra.mrb[0].mxu0 %v147
    %v907 = vpop.f32.mrb[0].mxu0
    %v908 = vadd.f32 %v855, %v907
    %v909 = vpop.f32.mrb[0].mxu0
    %v910 = vadd.f32 %v857, %v909
    %v911 = vpop.f32.mrb[0].mxu0
    %v912 = vadd.f32 %v859, %v911
    %v913 = vpop.f32.mrb[0].mxu0
    %v914 = vadd.f32 %v861, %v913
    %915 = vdwg.mxu0
    %916 = vmatprep.subr.bf16.mxu0 %v651
    %917 = vmatpush1.bf16.msra.mxu0 %v650
    %918 = vmatprep.subr.bf16.mxu0 0
    %919 = vmatpush1.bf16.msra.mxu0 0
    %920 = vmatprep.subr.bf16.mxu0 0
    %921 = vmatpush1.bf16.msra.mxu0 0
    %922 = vmatprep.subr.bf16.mxu0 0
    %923 = vmatpush1.bf16.msra.mxu0 0
    %924 = vmatprep.subr.bf16.mxu0 0
    %925 = vmatpush1.bf16.msra.mxu0 0
    %926 = vmatprep.subr.bf16.mxu0 0
    %927 = vmatpush1.bf16.msra.mxu0 0
    %928 = vmatprep.subr.bf16.mxu0 0
    %929 = vmatpush1.bf16.msra.mxu0 0
    %930 = vmatprep.subr.bf16.mxu0 0
    %931 = vmatpush1.bf16.msra.mxu0 0
    %932 = vmatprep.subr.bf16.mxu0 0
    %933 = vmatpush1.bf16.msra.mxu0 0
    %934 = vmatprep.subr.bf16.mxu0 0
    %935 = vmatpush1.bf16.msra.mxu0 0
    %936 = vmatprep.subr.bf16.mxu0 0
    %937 = vmatpush1.bf16.msra.mxu0 0
    %938 = vmatprep.subr.bf16.mxu0 0
    %939 = vmatpush1.bf16.msra.mxu0 0
    %940 = vmatprep.subr.bf16.mxu0 0
    %941 = vmatpush1.bf16.msra.mxu0 0
    %942 = vmatprep.subr.bf16.mxu0 0
    %943 = vmatpush1.bf16.msra.mxu0 0
    %944 = vmatprep.subr.bf16.mxu0 0
    %945 = vmatpush1.bf16.msra.mxu0 0
    %946 = vmatprep.subr.bf16.mxu0 0
    %947 = vmatpush1.bf16.msra.mxu0 0
    %948 = vmatprep.mubr.bf16.mxu0 0
    %949 = vmatmul.mubr.bf16.gmra.mrb[0].mxu0 %v752
    %v950 = vpop.f32.mrb[0].mxu0
    %v951 = vadd.f32 %v898, %v950
    %v952 = vpop.f32.mrb[0].mxu0
    %v953 = vadd.f32 %v900, %v952
    %v954 = vpop.f32.mrb[0].mxu0
    %v955 = vadd.f32 %v902, %v954
    %v956 = vpop.f32.mrb[0].mxu0
    %v957 = vadd.f32 %v904, %v956
    %958 = vmatprep.mubr.bf16.mxu0 0
    %959 = vmatmul.mubr.bf16.gmra.mrb[0].mxu0 %v755
    %v960 = vpop.f32.mrb[0].mxu0
    %v961 = vadd.f32 %v908, %v960
    %v962 = vpop.f32.mrb[0].mxu0
    %v963 = vadd.f32 %v910, %v962
    %v964 = vpop.f32.mrb[0].mxu0
    %v965 = vadd.f32 %v912, %v964
    %v966 = vpop.f32.mrb[0].mxu0
    %v967 = vadd.f32 %v914, %v966
    %968 = vdwg.mxu0
    %v969 = vmax.f32 %v951, 0.0
    %v970 = vmax.f32 %v953, 0.0
    %v971 = vmax.f32 %v955, 0.0
    %v972 = vmax.f32 %v957, 0.0
    %v973 = vmax.f32 %v961, 0.0
    %v974 = vmax.f32 %v963, 0.0
    %v975 = vmax.f32 %v965, 0.0
    %v976 = vmax.f32 %v967, 0.0
    %v977 = vpack.c.bf16 %v971, %v969
    %v978 = vpack.c.bf16 %v972, %v970
    %v979 = vpack.c.bf16 %v975, %v973
    %v980 = vpack.c.bf16 %v976, %v974
    %v981 = vld [vmem:[#allocation7] sm:$0xf]
    %v982 = vld [vmem:[#allocation7 + $0x4] sm:$0xf]
    %v983 = vld [vmem:[#allocation7 + $0x8] sm:$0xf]
    %v984 = vld [vmem:[#allocation7 + $0xc] sm:$0xf]
    %v985 = vld [vmem:[#allocation7 + $0x10] sm:$0xf]
    %v986 = vld [vmem:[#allocation7 + $0x14] sm:$0xf]
    %v987 = vld [vmem:[#allocation7 + $0x18] sm:$0xf]
    %v988 = vld [vmem:[#allocation7 + $0x1c] sm:$0xf]
    %v989 = vld [vmem:[#allocation7 + $0x20] sm:$0xf]
    %v990 = vld [vmem:[#allocation7 + $0x24] sm:$0xf]
    %v991 = vld [vmem:[#allocation7 + $0x28] sm:$0xf]
    %v992 = vld [vmem:[#allocation7 + $0x2c] sm:$0xf]
    %v993 = vld [vmem:[#allocation7 + $0x30] sm:$0xf]
    %v994 = vld [vmem:[#allocation7 + $0x34] sm:$0xf]
    %v995 = vld [vmem:[#allocation7 + $0x38] sm:$0xf]
    %v996 = vld [vmem:[#allocation7 + $0x3c] sm:$0xf]
    %v997 = vld [vmem:[#allocation7 + $0x40] sm:$0xf]
    %v998 = vld [vmem:[#allocation7 + $0x44] sm:$0xf]
    %v999 = vld [vmem:[#allocation7 + $0x48] sm:$0xf]
    %v1000 = vld [vmem:[#allocation7 + $0x4c] sm:$0xf]
    %v1001 = vld [vmem:[#allocation7 + $0x50] sm:$0xf]
    %v1002 = vld [vmem:[#allocation7 + $0x54] sm:$0xf]
    %v1003 = vld [vmem:[#allocation7 + $0x58] sm:$0xf]
    %v1004 = vld [vmem:[#allocation7 + $0x5c] sm:$0xf]
    %v1005 = vld [vmem:[#allocation7 + $0x60] sm:$0xf]
    %v1006 = vld [vmem:[#allocation7 + $0x64] sm:$0xf]
    %v1007 = vld [vmem:[#allocation7 + $0x68] sm:$0xf]
    %v1008 = vld [vmem:[#allocation7 + $0x6c] sm:$0xf]
    %v1009 = vld [vmem:[#allocation7 + $0x70] sm:$0xf]
    %v1010 = vld [vmem:[#allocation7 + $0x74] sm:$0xf]
    %v1011 = vld [vmem:[#allocation7 + $0x78] sm:$0xf]
    %v1012 = vld [vmem:[#allocation7 + $0x7c] sm:$0xf]
    %v1013 = vld [vmem:[%s4] sm:$0x1]
    %v1015 = vlaneseq
    %v1016 = vshrl.u32 %v1015, 7
    %v1017 = vsub.s32 0, %v1016
    %v1018 = vrot.slane %v1013, %v1017
    %v1052 = vunpack.c.l.b16 %v981
    %v1053 = vunpack.c.l.b16 %v982
    %v1054 = vunpack.c.l.b16 %v983
    %v1055 = vunpack.c.l.b16 %v984
    %v1056 = vunpack.c.l.b16 %v985
    %v1057 = vunpack.c.l.b16 %v986
    %v1058 = vunpack.c.l.b16 %v987
    %v1059 = vunpack.c.l.b16 %v988
    %v1060 = vunpack.c.l.b16 %v989
    %v1061 = vunpack.c.l.b16 %v990
    %v1062 = vunpack.c.l.b16 %v991
    %v1063 = vunpack.c.l.b16 %v992
    %v1064 = vunpack.c.l.b16 %v993
    %v1065 = vunpack.c.l.b16 %v994
    %v1066 = vunpack.c.l.b16 %v995
    %v1067 = vunpack.c.l.b16 %v996
    %v1068 = vunpack.c.l.b16 %v997
    %v1069 = vunpack.c.l.b16 %v998
    %v1070 = vunpack.c.l.b16 %v999
    %v1071 = vunpack.c.l.b16 %v1000
    %v1072 = vunpack.c.l.b16 %v1001
    %v1073 = vunpack.c.l.b16 %v1002
    %v1074 = vunpack.c.l.b16 %v1003
    %v1075 = vunpack.c.l.b16 %v1004
    %v1076 = vunpack.c.l.b16 %v1005
    %v1077 = vunpack.c.l.b16 %v1006
    %v1078 = vunpack.c.l.b16 %v1007
    %v1079 = vunpack.c.l.b16 %v1008
    %v1080 = vunpack.c.l.b16 %v1009
    %v1081 = vunpack.c.l.b16 %v1010
    %v1082 = vunpack.c.l.b16 %v1011
    %v1083 = vunpack.c.l.b16 %v1012
    %v1084 = vpack.c.b16 %v1053, %v1052
    %v1085 = vpack.c.b16 %v1055, %v1054
    %v1086 = vpack.c.b16 %v1057, %v1056
    %v1087 = vpack.c.b16 %v1059, %v1058
    %v1088 = vpack.c.b16 %v1061, %v1060
    %v1089 = vpack.c.b16 %v1063, %v1062
    %v1090 = vpack.c.b16 %v1065, %v1064
    %v1091 = vpack.c.b16 %v1067, %v1066
    %v1092 = vpack.c.b16 %v1069, %v1068
    %v1093 = vpack.c.b16 %v1071, %v1070
    %v1094 = vpack.c.b16 %v1073, %v1072
    %v1095 = vpack.c.b16 %v1075, %v1074
    %v1096 = vpack.c.b16 %v1077, %v1076
    %v1097 = vpack.c.b16 %v1079, %v1078
    %v1098 = vpack.c.b16 %v1081, %v1080
    %v1099 = vpack.c.b16 %v1083, %v1082
    %1116 = vmatprep.subr.bf16.mxu0 0
    %1117 = vmatpush1.bf16.msra.mxu0 %v1084
    %1118 = vmatprep.subr.bf16.mxu0 0
    %1119 = vmatpush1.bf16.msra.mxu0 %v1085
    %1120 = vmatprep.subr.bf16.mxu0 0
    %1121 = vmatpush1.bf16.msra.mxu0 %v1086
    %1122 = vmatprep.subr.bf16.mxu0 0
    %1123 = vmatpush1.bf16.msra.mxu0 %v1087
    %1124 = vmatprep.subr.bf16.mxu0 0
    %1125 = vmatpush1.bf16.msra.mxu0 %v1088
    %1126 = vmatprep.subr.bf16.mxu0 0
    %1127 = vmatpush1.bf16.msra.mxu0 %v1089
    %1128 = vmatprep.subr.bf16.mxu0 0
    %1129 = vmatpush1.bf16.msra.mxu0 %v1090
    %1130 = vmatprep.subr.bf16.mxu0 0
    %1131 = vmatpush1.bf16.msra.mxu0 %v1091
    %1132 = vmatprep.subr.bf16.mxu0 0
    %1133 = vmatpush1.bf16.msra.mxu0 %v1092
    %1134 = vmatprep.subr.bf16.mxu0 0
    %1135 = vmatpush1.bf16.msra.mxu0 %v1093
    %1136 = vmatprep.subr.bf16.mxu0 0
    %1137 = vmatpush1.bf16.msra.mxu0 %v1094
    %1138 = vmatprep.subr.bf16.mxu0 0
    %1139 = vmatpush1.bf16.msra.mxu0 %v1095
    %1140 = vmatprep.subr.bf16.mxu0 0
    %1141 = vmatpush1.bf16.msra.mxu0 %v1096
    %1142 = vmatprep.subr.bf16.mxu0 0
    %1143 = vmatpush1.bf16.msra.mxu0 %v1097
    %1144 = vmatprep.subr.bf16.mxu0 0
    %1145 = vmatpush1.bf16.msra.mxu0 %v1098
    %1146 = vmatprep.subr.bf16.mxu0 0
    %1147 = vmatpush1.bf16.msra.mxu0 %v1099
    %1148 = vmatprep.mubr.bf16.mxu0 %v978
    %1149 = vmatmul.mubr.bf16.gmra.mrb[0].mxu0 %v977
    %v1150 = vpop.f32.mrb[0].mxu0
    %v1151 = vadd.f32 %v1018, %v1150
    %v1152 = vpop.f32.mrb[0].mxu0
    %v1153 = vpop.f32.mrb[0].mxu0
    %v1154 = vadd.f32 %v1018, %v1153
    %v1155 = vpop.f32.mrb[0].mxu0
    %1156 = vmatprep.mubr.bf16.mxu0 %v980
    %1157 = vmatmul.mubr.bf16.gmra.mrb[0].mxu0 %v979
    %v1158 = vpop.f32.mrb[0].mxu0
    %v1159 = vadd.f32 %v1018, %v1158
    %v1160 = vpop.f32.mrb[0].mxu0
    %v1161 = vpop.f32.mrb[0].mxu0
    %v1162 = vadd.f32 %v1018, %v1161
    %v1163 = vpop.f32.mrb[0].mxu0
    %1164 = vdwg.mxu0
    %v1165 = vmax.f32 %v1151, 0.0
    %v1166 = vmax.f32 %v1154, 0.0
    %v1167 = vmax.f32 %v1159, 0.0
    %v1168 = vmax.f32 %v1162, 0.0
    %v1169 = vlaneseq
    %v1170 = vshrl.u32 %v1169, 7
    %v1171 = vadd.s32 %v1170, 8
    %v1172 = vadd.s32 %v1170, 16
    %v1173 = vadd.s32 %v1170, 24
    %vm1174 = vcmp.lt.s32.totalorder %v1170, 32
    %vm1175 = vcmp.lt.s32.totalorder %v1171, 32
    %vm1176 = vcmp.lt.s32.totalorder %v1172, 32
    %vm1177 = vcmp.lt.s32.totalorder %v1173, 32
    %v1178 = vsel %vm1174, 1, 0
    %v1179 = vsel %vm1175, 1, 0
    %v1180 = vsel %vm1176, 1, 0
    %v1181 = vsel %vm1177, 1, 0
    %vm1182 = vcmp.eq.s32.totalorder %v1178, 1
    %vm1183 = vcmp.eq.s32.totalorder %v1179, 1
    %vm1184 = vcmp.eq.s32.totalorder %v1180, 1
    %vm1185 = vcmp.eq.s32.totalorder %v1181, 1
    %v1186 = vsel %vm1182, %v1165, 0.0
    %v1187 = vsel %vm1183, %v1166, 0.0
    %v1188 = vsel %vm1184, %v1167, 0.0
    %v1189 = vsel %vm1185, %v1168, 0.0
    %v1190 = vadd.f32 %v1186, %v1187
    %v1191 = vadd.f32 %v1190, %v1188
    %v1192 = vadd.f32 %v1191, %v1189
    %v1193 = vrot.slane %v1192, 4
    %v1194 = vadd.f32 %v1192, %v1193
    %v1195 = vrot.slane %v1194, 2
    %v1196 = vadd.f32 %v1194, %v1195
    %v1197 = vrot.slane %v1196, 1
    %v1198 = vadd.f32 %v1196, %v1197
    %v1199 = vmul.f32 %v1198, 0.03125
    %v1200 = vsub.f32 %v1165, %v1199
    %v1201 = vsub.f32 %v1166, %v1199
    %v1202 = vsub.f32 %v1167, %v1199
    %v1203 = vsub.f32 %v1168, %v1199
    %v1204 = vsel %vm1182, %v1200, 0.0
    %v1205 = vsel %vm1183, %v1201, 0.0
    %v1206 = vsel %vm1184, %v1202, 0.0
    %v1207 = vsel %vm1185, %v1203, 0.0
    %v1208 = vmul.f32 %v1204, %v1204
    %v1209 = vmul.f32 %v1205, %v1205
    %v1210 = vmul.f32 %v1206, %v1206
    %v1211 = vmul.f32 %v1207, %v1207
    %v1212 = vadd.f32 %v1208, %v1209
    %v1213 = vadd.f32 %v1212, %v1210
    %v1214 = vadd.f32 %v1213, %v1211
    %v1215 = vrot.slane %v1214, 4
    %v1216 = vadd.f32 %v1214, %v1215
    %v1217 = vrot.slane %v1216, 2
    %v1218 = vadd.f32 %v1216, %v1217
    %v1219 = vrot.slane %v1218, 1
    %v1220 = vadd.f32 %v1218, %v1219
    %v1221 = vmul.f32 %v1220, 0.03125
    %v1222 = vld [vmem:[%s5] sm:$0x1]
    %v1223 = vadd.f32 %v1221, 1e-05
    %v1224 = vrsqrt.pop %v1223
    %v1225 = vmul.f32 %v1222, %v1224
    %v1227 = vlaneseq
    %v1228 = vshrl.u32 %v1227, 7
    %v1229 = vsub.s32 0, %v1228
    %v1230 = vrot.slane %v1225, %v1229
    %v1232 = vmul.f32 %v1200, %v1230
    %v1233 = vmul.f32 %v1201, %v1230
    %v1234 = vmul.f32 %v1202, %v1230
    %v1235 = vmul.f32 %v1203, %v1230
    %v1236 = vld [vmem:[%s6] sm:$0x1]
    %v1238 = vlaneseq
    %v1239 = vshrl.u32 %v1238, 7
    %v1240 = vsub.s32 0, %v1239
    %v1241 = vrot.slane %v1236, %v1240
    %v1243 = vadd.f32 %v1232, %v1241
    %v1244 = vadd.f32 %v1233, %v1241
    %v1245 = vadd.f32 %v1234, %v1241
    %v1246 = vadd.f32 %v1235, %v1241
    %v1247 = vpack.c.bf16 %v1244, %v1243
    %v1248 = vpack.c.bf16 %v1246, %v1245
    %v1249 = vld [vmem:[#allocation8] sm:$0xf]
    %v1250 = vld [vmem:[#allocation8 + $0x4] sm:$0xf]
    %v1251 = vld [vmem:[#allocation8 + $0x8] sm:$0xf]
    %v1252 = vld [vmem:[#allocation8 + $0xc] sm:$0xf]
    %v1253 = vld [vmem:[#allocation8 + $0x10] sm:$0xf]
    %v1254 = vld [vmem:[#allocation8 + $0x14] sm:$0xf]
    %v1255 = vld [vmem:[#allocation8 + $0x18] sm:$0xf]
    %v1256 = vld [vmem:[#allocation8 + $0x1c] sm:$0xf]
    %v1257 = vld [vmem:[#allocation8 + $0x20] sm:$0xf]
    %v1258 = vld [vmem:[#allocation8 + $0x24] sm:$0xf]
    %v1259 = vld [vmem:[#allocation8 + $0x28] sm:$0xf]
    %v1260 = vld [vmem:[#allocation8 + $0x2c] sm:$0xf]
    %v1261 = vld [vmem:[#allocation8 + $0x30] sm:$0xf]
    %v1262 = vld [vmem:[#allocation8 + $0x34] sm:$0xf]
    %v1263 = vld [vmem:[#allocation8 + $0x38] sm:$0xf]
    %v1264 = vld [vmem:[#allocation8 + $0x3c] sm:$0xf]
    %v1265 = vld [vmem:[%s8] sm:$0x1]
    %v1267 = vlaneseq
    %v1268 = vshrl.u32 %v1267, 7
    %v1269 = vsub.s32 0, %v1268
    %v1270 = vrot.slane %v1265, %v1269
    %v1288 = vunpack.c.l.b16 %v1249
    %v1289 = vunpack.c.l.b16 %v1250
    %v1290 = vunpack.c.l.b16 %v1251
    %v1291 = vunpack.c.l.b16 %v1252
    %v1292 = vunpack.c.l.b16 %v1253
    %v1293 = vunpack.c.l.b16 %v1254
    %v1294 = vunpack.c.l.b16 %v1255
    %v1295 = vunpack.c.l.b16 %v1256
    %v1296 = vunpack.c.l.b16 %v1257
    %v1297 = vunpack.c.l.b16 %v1258
    %v1298 = vunpack.c.l.b16 %v1259
    %v1299 = vunpack.c.l.b16 %v1260
    %v1300 = vunpack.c.l.b16 %v1261
    %v1301 = vunpack.c.l.b16 %v1262
    %v1302 = vunpack.c.l.b16 %v1263
    %v1303 = vunpack.c.l.b16 %v1264
    %v1304 = vpack.c.b16 %v1289, %v1288
    %v1305 = vpack.c.b16 %v1291, %v1290
    %v1306 = vpack.c.b16 %v1293, %v1292
    %v1307 = vpack.c.b16 %v1295, %v1294
    %v1308 = vpack.c.b16 %v1297, %v1296
    %v1309 = vpack.c.b16 %v1299, %v1298
    %v1310 = vpack.c.b16 %v1301, %v1300
    %v1311 = vpack.c.b16 %v1303, %v1302
    %1320 = vmatprep.subr.bf16.mxu0 0
    %1321 = vmatpush1.bf16.msra.mxu0 %v1304
    %1322 = vmatprep.subr.bf16.mxu0 0
    %1323 = vmatpush1.bf16.msra.mxu0 %v1305
    %1324 = vmatprep.subr.bf16.mxu0 0
    %1325 = vmatpush1.bf16.msra.mxu0 %v1306
    %1326 = vmatprep.subr.bf16.mxu0 0
    %1327 = vmatpush1.bf16.msra.mxu0 %v1307
    %1328 = vmatprep.subr.bf16.mxu0 0
    %1329 = vmatpush1.bf16.msra.mxu0 %v1308
    %1330 = vmatprep.subr.bf16.mxu0 0
    %1331 = vmatpush1.bf16.msra.mxu0 %v1309
    %1332 = vmatprep.subr.bf16.mxu0 0
    %1333 = vmatpush1.bf16.msra.mxu0 %v1310
    %1334 = vmatprep.subr.bf16.mxu0 0
    %1335 = vmatpush1.bf16.msra.mxu0 %v1311
    %1336 = vmatprep.subr.bf16.mxu0 0
    %1337 = vmatpush1.bf16.msra.mxu0 0
    %1338 = vmatprep.subr.bf16.mxu0 0
    %1339 = vmatpush1.bf16.msra.mxu0 0
    %1340 = vmatprep.subr.bf16.mxu0 0
    %1341 = vmatpush1.bf16.msra.mxu0 0
    %1342 = vmatprep.subr.bf16.mxu0 0
    %1343 = vmatpush1.bf16.msra.mxu0 0
    %1344 = vmatprep.subr.bf16.mxu0 0
    %1345 = vmatpush1.bf16.msra.mxu0 0
    %1346 = vmatprep.subr.bf16.mxu0 0
    %1347 = vmatpush1.bf16.msra.mxu0 0
    %1348 = vmatprep.subr.bf16.mxu0 0
    %1349 = vmatpush1.bf16.msra.mxu0 0
    %1350 = vmatprep.subr.bf16.mxu0 0
    %1351 = vmatpush1.bf16.msra.mxu0 0
    %1352 = vmatprep.mubr.bf16.mxu0 0
    %1353 = vmatmul.mubr.bf16.gmra.mrb[0].mxu0 %v1247
    %v1354 = vpop.f32.mrb[0].mxu0
    %v1355 = vadd.f32 %v1270, %v1354
    %v1356 = vpop.f32.mrb[0].mxu0
    %v1357 = vpop.f32.mrb[0].mxu0
    %v1358 = vadd.f32 %v1270, %v1357
    %v1359 = vpop.f32.mrb[0].mxu0
    %1360 = vmatprep.mubr.bf16.mxu0 0
    %1361 = vmatmul.mubr.bf16.gmra.mrb[0].mxu0 %v1248
    %v1362 = vpop.f32.mrb[0].mxu0
    %v1363 = vadd.f32 %v1270, %v1362
    %v1364 = vpop.f32.mrb[0].mxu0
    %v1365 = vpop.f32.mrb[0].mxu0
    %v1366 = vadd.f32 %v1270, %v1365
    %v1367 = vpop.f32.mrb[0].mxu0
    %1368 = vdwg.mxu0
    %v1369 = vmax.f32 %v1355, 0.0
    %v1370 = vmax.f32 %v1358, 0.0
    %v1371 = vmax.f32 %v1363, 0.0
    %v1372 = vmax.f32 %v1366, 0.0
    %v1373 = vpack.c.bf16 %v1370, %v1369
    %v1374 = vpack.c.bf16 %v1372, %v1371
    %v1375 = vld [vmem:[#allocation10] sm:$0xf]
    %v1376 = vld [vmem:[#allocation10 + $0x4] sm:$0xf]
    %v1377 = vld [vmem:[#allocation10 + $0x8] sm:$0xf]
    %v1378 = vld [vmem:[#allocation10 + $0xc] sm:$0xf]
    %v1379 = vld [vmem:[#allocation10 + $0x10] sm:$0xf]
    %v1380 = vld [vmem:[#allocation10 + $0x14] sm:$0xf]
    %v1381 = vld [vmem:[#allocation10 + $0x18] sm:$0xf]
    %v1382 = vld [vmem:[#allocation10 + $0x1c] sm:$0xf]
    %v1383 = vld [vmem:[#allocation10 + $0x20] sm:$0xf]
    %v1384 = vld [vmem:[#allocation10 + $0x24] sm:$0xf]
    %v1385 = vld [vmem:[#allocation10 + $0x28] sm:$0xf]
    %v1386 = vld [vmem:[#allocation10 + $0x2c] sm:$0xf]
    %v1387 = vld [vmem:[#allocation10 + $0x30] sm:$0xf]
    %v1388 = vld [vmem:[#allocation10 + $0x34] sm:$0xf]
    %v1389 = vld [vmem:[#allocation10 + $0x38] sm:$0xf]
    %v1390 = vld [vmem:[#allocation10 + $0x3c] sm:$0xf]
    %v1391 = vld [vmem:[%s10] sm:$0x1]
    %v1393 = vlaneseq
    %v1394 = vshrl.u32 %v1393, 7
    %v1395 = vsub.s32 0, %v1394
    %v1396 = vrot.slane %v1391, %v1395
    %v1414 = vunpack.c.l.b16 %v1375
    %v1415 = vunpack.c.l.b16 %v1376
    %v1416 = vunpack.c.l.b16 %v1377
    %v1417 = vunpack.c.l.b16 %v1378
    %v1418 = vunpack.c.l.b16 %v1379
    %v1419 = vunpack.c.l.b16 %v1380
    %v1420 = vunpack.c.l.b16 %v1381
    %v1421 = vunpack.c.l.b16 %v1382
    %v1422 = vunpack.c.l.b16 %v1383
    %v1423 = vunpack.c.l.b16 %v1384
    %v1424 = vunpack.c.l.b16 %v1385
    %v1425 = vunpack.c.l.b16 %v1386
    %v1426 = vunpack.c.l.b16 %v1387
    %v1427 = vunpack.c.l.b16 %v1388
    %v1428 = vunpack.c.l.b16 %v1389
    %v1429 = vunpack.c.l.b16 %v1390
    %v1430 = vpack.c.b16 %v1415, %v1414
    %v1431 = vpack.c.b16 %v1417, %v1416
    %v1432 = vpack.c.b16 %v1419, %v1418
    %v1433 = vpack.c.b16 %v1421, %v1420
    %v1434 = vpack.c.b16 %v1423, %v1422
    %v1435 = vpack.c.b16 %v1425, %v1424
    %v1436 = vpack.c.b16 %v1427, %v1426
    %v1437 = vpack.c.b16 %v1429, %v1428
    %1446 = vmatprep.subr.bf16.mxu0 0
    %1447 = vmatpush1.bf16.msra.mxu0 %v1430
    %1448 = vmatprep.subr.bf16.mxu0 0
    %1449 = vmatpush1.bf16.msra.mxu0 %v1431
    %1450 = vmatprep.subr.bf16.mxu0 0
    %1451 = vmatpush1.bf16.msra.mxu0 %v1432
    %1452 = vmatprep.subr.bf16.mxu0 0
    %1453 = vmatpush1.bf16.msra.mxu0 %v1433
    %1454 = vmatprep.subr.bf16.mxu0 0
    %1455 = vmatpush1.bf16.msra.mxu0 %v1434
    %1456 = vmatprep.subr.bf16.mxu0 0
    %1457 = vmatpush1.bf16.msra.mxu0 %v1435
    %1458 = vmatprep.subr.bf16.mxu0 0
    %1459 = vmatpush1.bf16.msra.mxu0 %v1436
    %1460 = vmatprep.subr.bf16.mxu0 0
    %1461 = vmatpush1.bf16.msra.mxu0 %v1437
    %1462 = vmatprep.subr.bf16.mxu0 0
    %1463 = vmatpush1.bf16.msra.mxu0 0
    %1464 = vmatprep.subr.bf16.mxu0 0
    %1465 = vmatpush1.bf16.msra.mxu0 0
    %1466 = vmatprep.subr.bf16.mxu0 0
    %1467 = vmatpush1.bf16.msra.mxu0 0
    %1468 = vmatprep.subr.bf16.mxu0 0
    %1469 = vmatpush1.bf16.msra.mxu0 0
    %1470 = vmatprep.subr.bf16.mxu0 0
    %1471 = vmatpush1.bf16.msra.mxu0 0
    %1472 = vmatprep.subr.bf16.mxu0 0
    %1473 = vmatpush1.bf16.msra.mxu0 0
    %1474 = vmatprep.subr.bf16.mxu0 0
    %1475 = vmatpush1.bf16.msra.mxu0 0
    %1476 = vmatprep.subr.bf16.mxu0 0
    %1477 = vmatpush1.bf16.msra.mxu0 0
    %1478 = vmatprep.mubr.bf16.mxu0 0
    %1479 = vmatmul.mubr.bf16.gmra.mrb[0].mxu0 %v1373
    %v1480 = vpop.f32.mrb[0].mxu0
    %v1481 = vadd.f32 %v1396, %v1480
    %v1482 = vpop.f32.mrb[0].mxu0
    %v1483 = vpop.f32.mrb[0].mxu0
    %v1484 = vadd.f32 %v1396, %v1483
    %v1485 = vpop.f32.mrb[0].mxu0
    %1486 = vmatprep.mubr.bf16.mxu0 0
    %1487 = vmatmul.mubr.bf16.gmra.mrb[0].mxu0 %v1374
    %v1488 = vpop.f32.mrb[0].mxu0
    %v1489 = vadd.f32 %v1396, %v1488
    %v1490 = vpop.f32.mrb[0].mxu0
    %v1491 = vpop.f32.mrb[0].mxu0
    %v1492 = vadd.f32 %v1396, %v1491
    %v1493 = vpop.f32.mrb[0].mxu0
    %1494 = vdwg.mxu0
    %v1495 = vmax.f32 %v1481, 0.0
    %v1496 = vmax.f32 %v1484, 0.0
    %v1497 = vmax.f32 %v1489, 0.0
    %v1498 = vmax.f32 %v1492, 0.0
    %1499 = vst [vmem:[#allocation11] sm:$0xff] %v1495
    %1500 = vst [vmem:[#allocation11 + $0x8] sm:$0xff] %v1496
    %1501 = vst [vmem:[#allocation11 + $0x10] sm:$0xff] %v1497
    %1502 = vst [vmem:[#allocation11 + $0x18] sm:$0xff] %v1498
    // Predicated region
    $region66: #{linear_model_forward.1} parent=1 // pred_check
      _
    $region67: #{linear_model_forward.1} parent=1 // pred_check_branch
      %1504 = sbr.rel (0) target = $region69
    $region68: #{linear_model_forward.1} parent=1 // pred_region
      %s1506 = ssub.s32 512, 512
      %1507 = vsyncadd [#allocation4], %s1506
      %s1508 = sshll.u32 [#allocation11], 4
      %s1509 = int_to_ptr.vmem [resolvable:$true] %s1508
      %1514 = dma.vmem_to_hbm [thread:$0]  %s1509, 512, %s11, [#allocation4], 128, 128, 8
    $region69: #{linear_model_forward.1} parent=1 // pred_fallthru
      _
    // Predicated region
    $region70: #{linear_model_forward.1} parent=1 // pred_check
      _
    $region71: #{linear_model_forward.1} parent=1 // pred_check_branch
      %1516 = sbr.rel (0) target = $region73
    $region72: #{linear_model_forward.1} parent=1 // pred_region
      %1517 = dma.done [#allocation4], 512
    $region73: #{linear_model_forward.1} parent=1 // pred_fallthru
      _
    %1518 = vsyncpa [#allocation3], 1
    %1519 = vsyncpa [#allocation6], 1
    %1520 = vsyncpa [#allocation9], 1
    %1521 = vsyncpa [#allocation4], 1

</llo_original>
